<compile_context>
chip_gen: v6e
topology: v6e:2x2x1
jax: 0.10.0
libtpu: 0.0.40
codegen_flags: <defaults>
</compile_context>

<pallas_src>
import functools

import jax
import jax.numpy as jnp
from jax.experimental import pallas as pl
from jax.experimental.pallas import tpu as pltpu

EPS = 1e-5
_VMEM_LIMIT = 32 * 1024 * 1024  # budget against v7x (64 MiB phys / 32 MiB scoped)


def _round_up(a, b):
    return (a + b - 1) // b * b


# ----------------------------- Pallas kernels ------------------------------ #

def _conv_relu_stats_kernel(m_total, tile_m, need_mask,
                            p_ref, w_ref, b_ref, y_ref, s_ref, q_ref):
    """One M-tile of  y = relu(W @ patches + b)  plus partial BN sum / sumsq.

    p_ref: (K, TM) bf16   w_ref: (C, K) bf16   b_ref: (C, 1) f32
    y_ref: (C, TM)        s_ref/q_ref: (1, C, 1) f32 partial stats for this tile
    """
    y = jnp.dot(w_ref[...], p_ref[...], preferred_element_type=jnp.float32)
    y = jnp.maximum(y + b_ref[...], 0.0)

    if need_mask:  # rows added to pad M to a tile multiple must not pollute stats
        col = (pl.program_id(0) * tile_m
               + jax.lax.broadcasted_iota(jnp.int32, y.shape, 1))
        ym = jnp.where(col < m_total, y, 0.0)
    else:
        ym = y
    s_ref[0] = jnp.sum(ym, axis=1, keepdims=True)        # (C, 1)
    q_ref[0] = jnp.sum(ym * ym, axis=1, keepdims=True)   # (C, 1)
    y_ref[...] = y.astype(y_ref.dtype)


def _conv_bias_kernel(p_ref, w_ref, b_ref, o_ref):
    """One M-tile of  o = W @ patches + b  (the strided `transform` conv)."""
    y = jnp.dot(w_ref[...], p_ref[...], preferred_element_type=jnp.float32)
    o_ref[...] = (y + b_ref[...]).astype(o_ref.dtype)


# --------------------------- tiled pallas_call ------------------------------ #

def _tiled_conv_call(p, w_t, bias_col, *, block_rows, with_relu_stats, out_dtype):
    """Gridded conv-as-GEMM over row tiles.  p: (K, M), w_t: (C, K), bias: (C, 1)."""
    K, M = p.shape
    C = w_t.shape[0]
    tm = min(block_rows, _round_up(M, 128))
    Mp = _round_up(M, tm)
    if Mp != M:
        p = jnp.pad(p, ((0, 0), (0, Mp - M)))
    grid = (Mp // tm,)

    in_specs = [
        pl.BlockSpec((K, tm), lambda i: (0, i)),   # patches: streamed over M tiles
        pl.BlockSpec((C, K), lambda i: (0, 0)),    # weights: VMEM-resident
        pl.BlockSpec((C, 1), lambda i: (0, 0)),    # bias:    VMEM-resident
    ]
    bytes_accessed = (p.size * p.dtype.itemsize
                      + w_t.size * w_t.dtype.itemsize
                      + bias_col.size * 4
                      + Mp * C * jnp.dtype(out_dtype).itemsize)
    cost = pl.CostEstimate(flops=2 * Mp * K * C, transcendentals=0,
                           bytes_accessed=bytes_accessed)
    cparams = pltpu.CompilerParams(dimension_semantics=("parallel",),
                                   vmem_limit_bytes=_VMEM_LIMIT)

    if with_relu_stats:
        kernel = functools.partial(_conv_relu_stats_kernel, M, tm, Mp != M)
        y, s_part, q_part = pl.pallas_call(
            kernel,
            grid=grid,
            in_specs=in_specs,
            out_specs=(
                pl.BlockSpec((C, tm), lambda i: (0, i)),
                pl.BlockSpec((1, C, 1), lambda i: (i, 0, 0)),
                pl.BlockSpec((1, C, 1), lambda i: (i, 0, 0)),
            ),
            out_shape=(
                jax.ShapeDtypeStruct((C, Mp), out_dtype),
                jax.ShapeDtypeStruct((grid[0], C, 1), jnp.float32),
                jax.ShapeDtypeStruct((grid[0], C, 1), jnp.float32),
            ),
            compiler_params=cparams,
            cost_estimate=cost,
        )(p, w_t, bias_col)
        # Combine per-tile partials -> global batch stats (biased var, like PyTorch).
        mean = jnp.sum(s_part, axis=0)[:, 0] / M
        ex2 = jnp.sum(q_part, axis=0)[:, 0] / M
        var = jnp.maximum(ex2 - mean * mean, 0.0)
        rstd = jax.lax.rsqrt(var + EPS)
        return y[:, :M], mean, rstd

    y = pl.pallas_call(
        _conv_bias_kernel,
        grid=grid,
        in_specs=in_specs,
        out_specs=pl.BlockSpec((C, tm), lambda i: (0, i)),
        out_shape=jax.ShapeDtypeStruct((C, Mp), out_dtype),
        compiler_params=cparams,
        cost_estimate=cost,
    )(p, w_t, bias_col)
    return y[:, :M]


# ------------------------------- JAX glue ----------------------------------- #

def _im2col_T(x_cnhw, k, stride, pad):
    """(C, N, H, W) -> transposed patches (k*k*C, N*Ho*Wo); K rows ordered [tap, c]."""
    C, N, H, W = x_cnhw.shape
    xp = jnp.pad(x_cnhw, ((0, 0), (0, 0), (pad, pad), (pad, pad)))
    Ho = (H + 2 * pad - k) // stride + 1
    Wo = (W + 2 * pad - k) // stride + 1
    taps = []
    for i in range(k):
        for j in range(k):
            taps.append(xp[:, :, i:i + stride * Ho:stride, j:j + stride * Wo:stride])
    p = jnp.stack(taps, axis=0)                       # (k*k, C, N, Ho, Wo)
    return p.reshape(k * k * C, N * Ho * Wo), Ho, Wo


def _w_to_matT(w_oikk):
    """PyTorch conv weight (O, I, kh, kw) -> (O, kh*kw*I), matching [tap, c] rows."""
    O, I, kh, kw = w_oikk.shape
    return jnp.transpose(w_oikk, (0, 2, 3, 1)).reshape(O, kh * kw * I)


def _fold_bn_into_conv(w_t, b, mean, rstd, num_taps):
    """conv((x - mean) * rstd) == conv'(x)  with per-input-channel scaled weights.

    Exact for a fresh BatchNorm2d (gamma=1, beta=0) in training mode.
    """
    scale = jnp.tile(rstd, num_taps)                  # column k = tap*C + c -> rstd[c]
    w_f = w_t * scale[None, :]
    b_f = b - w_f @ jnp.tile(mean, num_taps)
    return w_f, b_f


def init_block_params(key, in_ch, out_ch):
    """Deterministic init mimicking PyTorch default (uniform +-1/sqrt(fan_in))."""
    def conv_init(k, o, i, ks):
        kw_, kb_ = jax.random.split(k)
        bound = 1.0 / (i * ks * ks) ** 0.5
        w = jax.random.uniform(kw_, (o, i, ks, ks), jnp.float32, -bound, bound)
        b = jax.random.uniform(kb_, (o,), jnp.float32, -bound, bound)
        return w, b

    k1, k2, k3 = jax.random.split(key, 3)
    w1, b1 = conv_init(k1, out_ch, in_ch, 3)      # conv1
    w2, b2 = conv_init(k2, out_ch, out_ch, 3)     # conv2
    wt, bt = conv_init(k3, out_ch, out_ch, 4)     # transform (stride-2 conv)
    return dict(w1=w1, b1=b1, w2=w2, b2=b2, wt=wt, bt=bt)


def block_forward(params, x_nchw, *, block_rows=1024):
    """Forward pass of Block (up=False).  Input/output layout: NCHW (PyTorch)."""
    out_ch = params["w1"].shape[0]
    x = jnp.transpose(x_nchw, (1, 0, 2, 3)).astype(jnp.bfloat16)    # (Cin, N, H, W)
    _, N, H, W = x.shape

    # stage 1: conv1 -> ReLU, with fused per-channel sum/sumsq for BN1
    p1, Ho, Wo = _im2col_T(x, k=3, stride=1, pad=1)
    y1, mean1, rstd1 = _tiled_conv_call(
        p1, _w_to_matT(params["w1"]).astype(jnp.bfloat16),
        params["b1"].reshape(-1, 1),
        block_rows=block_rows, with_relu_stats=True, out_dtype=jnp.bfloat16)
    h1 = y1.reshape(out_ch, N, Ho, Wo)

    # stage 2: BN1 folded into conv2 -> ReLU, fused sum/sumsq for BN2
    w2f, b2f = _fold_bn_into_conv(_w_to_matT(params["w2"]), params["b2"],
                                  mean1, rstd1, num_taps=9)
    p2, Ho, Wo = _im2col_T(h1, k=3, stride=1, pad=1)
    y2, mean2, rstd2 = _tiled_conv_call(
        p2, w2f.astype(jnp.bfloat16), b2f.reshape(-1, 1),
        block_rows=block_rows, with_relu_stats=True, out_dtype=jnp.bfloat16)
    h2 = y2.reshape(out_ch, N, Ho, Wo)

    # stage 3: BN2 folded into `transform` (4x4 stride-2 conv), no ReLU/stats
    wtf, btf = _fold_bn_into_conv(_w_to_matT(params["wt"]), params["bt"],
                                  mean2, rstd2, num_taps=16)
    p3, Ho2, Wo2 = _im2col_T(h2, k=4, stride=2, pad=1)
    y3 = _tiled_conv_call(
        p3, wtf.astype(jnp.bfloat16), btf.reshape(-1, 1),
        block_rows=block_rows, with_relu_stats=False, out_dtype=jnp.float32)

    out = y3.reshape(out_ch, N, Ho2, Wo2)
    return jnp.transpose(out, (1, 0, 2, 3))            # -> NCHW


if __name__ == "__main__":
    key = jax.random.PRNGKey(0)
    k_param, k_x = jax.random.split(key)

    batch, in_ch, out_ch, spatial = 2, 4, 8, 16
    params = init_block_params(k_param, in_ch, out_ch)
    x = jax.random.normal(k_x, (batch, in_ch, spatial, spatial), jnp.float32)

    # block_rows=256 so the row grid has >1 step even at this toy size
    # (exercises the tiled / partial-stats path; default 1024 for real sizes).
    fwd = jax.jit(functools.partial(block_forward, block_rows=256))
    out = jax.block_until_ready(fwd(params, x))

    assert out.shape == (batch, out_ch, spatial // 2, spatial // 2), out.shape
    assert bool(jnp.all(jnp.isfinite(out)))
    print("KERNEL_OK")
</pallas_src>

<mosaic_0001>
module attributes {stable_mosaic.version = 11 : i64} {
  func.func @_conv_relu_stats_kernel(%arg0: i32, %arg1: memref<36x256xbf16, #tpu.memory_space<vmem>>, %arg2: memref<8x36xbf16, #tpu.memory_space<vmem>>, %arg3: memref<8x1xf32, #tpu.memory_space<vmem>>, %arg4: memref<8x256xbf16, #tpu.memory_space<vmem>>, %arg5: memref<1x8x1xf32, #tpu.memory_space<vmem>>, %arg6: memref<1x8x1xf32, #tpu.memory_space<vmem>>) attributes {dimension_semantics = [#tpu.dimension_semantics<parallel>], iteration_bounds = array<i64: 2>, scalar_prefetch = 0 : i64, scratch_operands = 0 : i64, tpu.core_type = #tpu.core_type<tc>, window_params = [{transform_indices = @transform_0, window_bounds = array<i64: 36, 256>}, {pipeline_mode = #tpu.pipeline_mode<synchronous>, transform_indices = @transform_1, window_bounds = array<i64: 8, 36>}, {pipeline_mode = #tpu.pipeline_mode<synchronous>, transform_indices = @transform_2, window_bounds = array<i64: 8, 1>}, {transform_indices = @transform_3, window_bounds = array<i64: 8, 256>}, {transform_indices = @transform_4, window_bounds = array<i64: 1, 8, 1>}, {transform_indices = @transform_5, window_bounds = array<i64: 1, 8, 1>}]} {
    %c0 = arith.constant 0 : index
    %c0_0 = arith.constant 0 : index
    %0 = vector.load %arg2[%c0, %c0_0] : memref<8x36xbf16, #tpu.memory_space<vmem>>, vector<8x36xbf16>
    %c0_1 = arith.constant 0 : index
    %c0_2 = arith.constant 0 : index
    %1 = vector.load %arg1[%c0_1, %c0_2] : memref<36x256xbf16, #tpu.memory_space<vmem>>, vector<36x256xbf16>
    %cst = arith.constant dense<0.000000e+00> : vector<8x256xf32>
    %2 = tpu.matmul %0, %1, %cst {dimension_numbers = #tpu.dot_dimension_numbers<[1], [0], [0], [1], [0, 0, 1, 1], [], []>} : vector<8x36xbf16>, vector<36x256xbf16>, vector<8x256xf32> -> vector<8x256xf32>
    %c0_3 = arith.constant 0 : index
    %c0_4 = arith.constant 0 : index
    %3 = vector.load %arg3[%c0_3, %c0_4] : memref<8x1xf32, #tpu.memory_space<vmem>>, vector<8x1xf32>
    %4 = vector.broadcast %3 : vector<8x1xf32> to vector<8x256xf32>
    %5 = arith.addf %2, %4 : vector<8x256xf32>
    %cst_5 = arith.constant 0.000000e+00 : f32
    %6 = vector.broadcast %cst_5 : f32 to vector<8x256xf32>
    %7 = arith.maximumf %5, %6 : vector<8x256xf32>
    %cst_6 = arith.constant dense<0.000000e+00> : vector<8xf32>
    %8 = vector.multi_reduction <add>, %7, %cst_6 [1] : vector<8x256xf32> to vector<8xf32>
    %9 = vector.shape_cast %8 : vector<8xf32> to vector<8x1xf32>
    %c0_7 = arith.constant 0 : index
    %c0_8 = arith.constant 0 : index
    %c0_9 = arith.constant 0 : index
    %10 = vector.load %arg5[%c0_7, %c0_8, %c0_9] : memref<1x8x1xf32, #tpu.memory_space<vmem>>, vector<1x8x1xf32>
    %11 = vector.shape_cast %10 : vector<1x8x1xf32> to vector<8x1xf32>
    %12 = vector.shape_cast %9 : vector<8x1xf32> to vector<1x8x1xf32>
    tpu.vector_store %arg5[%c0_7, %c0_8, %c0_9], %12 {strides = array<i32>} : memref<1x8x1xf32, #tpu.memory_space<vmem>>, vector<1x8x1xf32>,
    %13 = arith.mulf %7, %7 : vector<8x256xf32>
    %cst_10 = arith.constant dense<0.000000e+00> : vector<8xf32>
    %14 = vector.multi_reduction <add>, %13, %cst_10 [1] : vector<8x256xf32> to vector<8xf32>
    %15 = vector.shape_cast %14 : vector<8xf32> to vector<8x1xf32>
    %c0_11 = arith.constant 0 : index
    %c0_12 = arith.constant 0 : index
    %c0_13 = arith.constant 0 : index
    %16 = vector.load %arg6[%c0_11, %c0_12, %c0_13] : memref<1x8x1xf32, #tpu.memory_space<vmem>>, vector<1x8x1xf32>
    %17 = vector.shape_cast %16 : vector<1x8x1xf32> to vector<8x1xf32>
    %18 = vector.shape_cast %15 : vector<8x1xf32> to vector<1x8x1xf32>
    tpu.vector_store %arg6[%c0_11, %c0_12, %c0_13], %18 {strides = array<i32>} : memref<1x8x1xf32, #tpu.memory_space<vmem>>, vector<1x8x1xf32>,
    %19 = arith.truncf %7 : vector<8x256xf32> to vector<8x256xbf16>
    %c0_14 = arith.constant 0 : index
    %c0_15 = arith.constant 0 : index
    %20 = vector.load %arg4[%c0_14, %c0_15] : memref<8x256xbf16, #tpu.memory_space<vmem>>, vector<8x256xbf16>
    tpu.vector_store %arg4[%c0_14, %c0_15], %19 {strides = array<i32>} : memref<8x256xbf16, #tpu.memory_space<vmem>>, vector<8x256xbf16>,
    return
  }
  func.func @transform_0(%arg0: i32) -> (i32, i32) {
    %c0_i32 = arith.constant 0 : i32
    %c0_i32_0 = arith.constant 0 : i32
    return %c0_i32, %arg0 : i32, i32
  }
  func.func @transform_1(%arg0: i32) -> (i32, i32) {
    %c0_i32 = arith.constant 0 : i32
    %c0_i32_0 = arith.constant 0 : i32
    %c0_i32_1 = arith.constant 0 : i32
    return %c0_i32, %c0_i32_0 : i32, i32
  }
  func.func @transform_2(%arg0: i32) -> (i32, i32) {
    %c0_i32 = arith.constant 0 : i32
    %c0_i32_0 = arith.constant 0 : i32
    %c0_i32_1 = arith.constant 0 : i32
    return %c0_i32, %c0_i32_0 : i32, i32
  }
  func.func @transform_3(%arg0: i32) -> (i32, i32) {
    %c0_i32 = arith.constant 0 : i32
    %c0_i32_0 = arith.constant 0 : i32
    return %c0_i32, %arg0 : i32, i32
  }
  func.func @transform_4(%arg0: i32) -> (i32, i32, i32) {
    %c0_i32 = arith.constant 0 : i32
    %c0_i32_0 = arith.constant 0 : i32
    %c0_i32_1 = arith.constant 0 : i32
    return %arg0, %c0_i32, %c0_i32_0 : i32, i32, i32
  }
  func.func @transform_5(%arg0: i32) -> (i32, i32, i32) {
    %c0_i32 = arith.constant 0 : i32
    %c0_i32_0 = arith.constant 0 : i32
    %c0_i32_1 = arith.constant 0 : i32
    return %arg0, %c0_i32, %c0_i32_0 : i32, i32, i32
  }
}

module attributes {stable_mosaic.version = 11 : i64} {
  func.func @_conv_relu_stats_kernel(%arg0: i32, %arg1: memref<72x256xbf16, #tpu.memory_space<vmem>>, %arg2: memref<8x72xbf16, #tpu.memory_space<vmem>>, %arg3: memref<8x1xf32, #tpu.memory_space<vmem>>, %arg4: memref<8x256xbf16, #tpu.memory_space<vmem>>, %arg5: memref<1x8x1xf32, #tpu.memory_space<vmem>>, %arg6: memref<1x8x1xf32, #tpu.memory_space<vmem>>) attributes {dimension_semantics = [#tpu.dimension_semantics<parallel>], iteration_bounds = array<i64: 2>, scalar_prefetch = 0 : i64, scratch_operands = 0 : i64, tpu.core_type = #tpu.core_type<tc>, window_params = [{transform_indices = @transform_0, window_bounds = array<i64: 72, 256>}, {pipeline_mode = #tpu.pipeline_mode<synchronous>, transform_indices = @transform_1, window_bounds = array<i64: 8, 72>}, {pipeline_mode = #tpu.pipeline_mode<synchronous>, transform_indices = @transform_2, window_bounds = array<i64: 8, 1>}, {transform_indices = @transform_3, window_bounds = array<i64: 8, 256>}, {transform_indices = @transform_4, window_bounds = array<i64: 1, 8, 1>}, {transform_indices = @transform_5, window_bounds = array<i64: 1, 8, 1>}]} {
    %c0 = arith.constant 0 : index
    %c0_0 = arith.constant 0 : index
    %0 = vector.load %arg2[%c0, %c0_0] : memref<8x72xbf16, #tpu.memory_space<vmem>>, vector<8x72xbf16>
    %c0_1 = arith.constant 0 : index
    %c0_2 = arith.constant 0 : index
    %1 = vector.load %arg1[%c0_1, %c0_2] : memref<72x256xbf16, #tpu.memory_space<vmem>>, vector<72x256xbf16>
    %cst = arith.constant dense<0.000000e+00> : vector<8x256xf32>
    %2 = tpu.matmul %0, %1, %cst {dimension_numbers = #tpu.dot_dimension_numbers<[1], [0], [0], [1], [0, 0, 1, 1], [], []>} : vector<8x72xbf16>, vector<72x256xbf16>, vector<8x256xf32> -> vector<8x256xf32>
    %c0_3 = arith.constant 0 : index
    %c0_4 = arith.constant 0 : index
    %3 = vector.load %arg3[%c0_3, %c0_4] : memref<8x1xf32, #tpu.memory_space<vmem>>, vector<8x1xf32>
    %4 = vector.broadcast %3 : vector<8x1xf32> to vector<8x256xf32>
    %5 = arith.addf %2, %4 : vector<8x256xf32>
    %cst_5 = arith.constant 0.000000e+00 : f32
    %6 = vector.broadcast %cst_5 : f32 to vector<8x256xf32>
    %7 = arith.maximumf %5, %6 : vector<8x256xf32>
    %cst_6 = arith.constant dense<0.000000e+00> : vector<8xf32>
    %8 = vector.multi_reduction <add>, %7, %cst_6 [1] : vector<8x256xf32> to vector<8xf32>
    %9 = vector.shape_cast %8 : vector<8xf32> to vector<8x1xf32>
    %c0_7 = arith.constant 0 : index
    %c0_8 = arith.constant 0 : index
    %c0_9 = arith.constant 0 : index
    %10 = vector.load %arg5[%c0_7, %c0_8, %c0_9] : memref<1x8x1xf32, #tpu.memory_space<vmem>>, vector<1x8x1xf32>
    %11 = vector.shape_cast %10 : vector<1x8x1xf32> to vector<8x1xf32>
    %12 = vector.shape_cast %9 : vector<8x1xf32> to vector<1x8x1xf32>
    tpu.vector_store %arg5[%c0_7, %c0_8, %c0_9], %12 {strides = array<i32>} : memref<1x8x1xf32, #tpu.memory_space<vmem>>, vector<1x8x1xf32>,
    %13 = arith.mulf %7, %7 : vector<8x256xf32>
    %cst_10 = arith.constant dense<0.000000e+00> : vector<8xf32>
    %14 = vector.multi_reduction <add>, %13, %cst_10 [1] : vector<8x256xf32> to vector<8xf32>
    %15 = vector.shape_cast %14 : vector<8xf32> to vector<8x1xf32>
    %c0_11 = arith.constant 0 : index
    %c0_12 = arith.constant 0 : index
    %c0_13 = arith.constant 0 : index
    %16 = vector.load %arg6[%c0_11, %c0_12, %c0_13] : memref<1x8x1xf32, #tpu.memory_space<vmem>>, vector<1x8x1xf32>
    %17 = vector.shape_cast %16 : vector<1x8x1xf32> to vector<8x1xf32>
    %18 = vector.shape_cast %15 : vector<8x1xf32> to vector<1x8x1xf32>
    tpu.vector_store %arg6[%c0_11, %c0_12, %c0_13], %18 {strides = array<i32>} : memref<1x8x1xf32, #tpu.memory_space<vmem>>, vector<1x8x1xf32>,
    %19 = arith.truncf %7 : vector<8x256xf32> to vector<8x256xbf16>
    %c0_14 = arith.constant 0 : index
    %c0_15 = arith.constant 0 : index
    %20 = vector.load %arg4[%c0_14, %c0_15] : memref<8x256xbf16, #tpu.memory_space<vmem>>, vector<8x256xbf16>
    tpu.vector_store %arg4[%c0_14, %c0_15], %19 {strides = array<i32>} : memref<8x256xbf16, #tpu.memory_space<vmem>>, vector<8x256xbf16>,
    return
  }
  func.func @transform_0(%arg0: i32) -> (i32, i32) {
    %c0_i32 = arith.constant 0 : i32
    %c0_i32_0 = arith.constant 0 : i32
    return %c0_i32, %arg0 : i32, i32
  }
  func.func @transform_1(%arg0: i32) -> (i32, i32) {
    %c0_i32 = arith.constant 0 : i32
    %c0_i32_0 = arith.constant 0 : i32
    %c0_i32_1 = arith.constant 0 : i32
    return %c0_i32, %c0_i32_0 : i32, i32
  }
  func.func @transform_2(%arg0: i32) -> (i32, i32) {
    %c0_i32 = arith.constant 0 : i32
    %c0_i32_0 = arith.constant 0 : i32
    %c0_i32_1 = arith.constant 0 : i32
    return %c0_i32, %c0_i32_0 : i32, i32
  }
  func.func @transform_3(%arg0: i32) -> (i32, i32) {
    %c0_i32 = arith.constant 0 : i32
    %c0_i32_0 = arith.constant 0 : i32
    return %c0_i32, %arg0 : i32, i32
  }
  func.func @transform_4(%arg0: i32) -> (i32, i32, i32) {
    %c0_i32 = arith.constant 0 : i32
    %c0_i32_0 = arith.constant 0 : i32
    %c0_i32_1 = arith.constant 0 : i32
    return %arg0, %c0_i32, %c0_i32_0 : i32, i32, i32
  }
  func.func @transform_5(%arg0: i32) -> (i32, i32, i32) {
    %c0_i32 = arith.constant 0 : i32
    %c0_i32_0 = arith.constant 0 : i32
    %c0_i32_1 = arith.constant 0 : i32
    return %arg0, %c0_i32, %c0_i32_0 : i32, i32, i32
  }
}

module attributes {stable_mosaic.version = 11 : i64} {
  func.func @_conv_bias_kernel(%arg0: i32, %arg1: memref<128x128xbf16, #tpu.memory_space<vmem>>, %arg2: memref<8x128xbf16, #tpu.memory_space<vmem>>, %arg3: memref<8x1xf32, #tpu.memory_space<vmem>>, %arg4: memref<8x128xf32, #tpu.memory_space<vmem>>) attributes {dimension_semantics = [#tpu.dimension_semantics<parallel>], iteration_bounds = array<i64: 1>, scalar_prefetch = 0 : i64, scratch_operands = 0 : i64, tpu.core_type = #tpu.core_type<tc>, window_params = [{transform_indices = @transform_0, window_bounds = array<i64: 128, 128>}, {pipeline_mode = #tpu.pipeline_mode<synchronous>, transform_indices = @transform_1, window_bounds = array<i64: 8, 128>}, {pipeline_mode = #tpu.pipeline_mode<synchronous>, transform_indices = @transform_2, window_bounds = array<i64: 8, 1>}, {transform_indices = @transform_3, window_bounds = array<i64: 8, 128>}]} {
    %c0 = arith.constant 0 : index
    %c0_0 = arith.constant 0 : index
    %0 = vector.load %arg2[%c0, %c0_0] : memref<8x128xbf16, #tpu.memory_space<vmem>>, vector<8x128xbf16>
    %c0_1 = arith.constant 0 : index
    %c0_2 = arith.constant 0 : index
    %1 = vector.load %arg1[%c0_1, %c0_2] : memref<128x128xbf16, #tpu.memory_space<vmem>>, vector<128x128xbf16>
    %cst = arith.constant dense<0.000000e+00> : vector<8x128xf32>
    %2 = tpu.matmul %0, %1, %cst {dimension_numbers = #tpu.dot_dimension_numbers<[1], [0], [0], [1], [0, 0, 1, 1], [], []>} : vector<8x128xbf16>, vector<128x128xbf16>, vector<8x128xf32> -> vector<8x128xf32>
    %c0_3 = arith.constant 0 : index
    %c0_4 = arith.constant 0 : index
    %3 = vector.load %arg3[%c0_3, %c0_4] : memref<8x1xf32, #tpu.memory_space<vmem>>, vector<8x1xf32>
    %4 = vector.broadcast %3 : vector<8x1xf32> to vector<8x128xf32>
    %5 = arith.addf %2, %4 : vector<8x128xf32>
    %c0_5 = arith.constant 0 : index
    %c0_6 = arith.constant 0 : index
    %6 = vector.load %arg4[%c0_5, %c0_6] : memref<8x128xf32, #tpu.memory_space<vmem>>, vector<8x128xf32>
    tpu.vector_store %arg4[%c0_5, %c0_6], %5 {strides = array<i32>} : memref<8x128xf32, #tpu.memory_space<vmem>>, vector<8x128xf32>,
    return
  }
  func.func @transform_0(%arg0: i32) -> (i32, i32) {
    %c0_i32 = arith.constant 0 : i32
    %c0_i32_0 = arith.constant 0 : i32
    return %c0_i32, %arg0 : i32, i32
  }
  func.func @transform_1(%arg0: i32) -> (i32, i32) {
    %c0_i32 = arith.constant 0 : i32
    %c0_i32_0 = arith.constant 0 : i32
    %c0_i32_1 = arith.constant 0 : i32
    return %c0_i32, %c0_i32_0 : i32, i32
  }
  func.func @transform_2(%arg0: i32) -> (i32, i32) {
    %c0_i32 = arith.constant 0 : i32
    %c0_i32_0 = arith.constant 0 : i32
    %c0_i32_1 = arith.constant 0 : i32
    return %c0_i32, %c0_i32_0 : i32, i32
  }
  func.func @transform_3(%arg0: i32) -> (i32, i32) {
    %c0_i32 = arith.constant 0 : i32
    %c0_i32_0 = arith.constant 0 : i32
    return %c0_i32, %arg0 : i32, i32
  }
}

</mosaic_0001>

<llo_original>
// kernel: block_forward.3
$region0: #{block_forward.3}
  #allocation0 [shape = 'u32[]', space=smem, size = 0x4, offset = 0x4, fixed_abs, tag = 'smem constant byte address 0x4 - core index']
  #allocation1 [shape = 'u32[144,128]{1,0:T(1,128)}', space=vmem, size = 0x12000, scoped, tag = 'internal scratch']
  %s0 = inlined_call_operand.vmem [shape: bf16[36,512], index: 0, kind: input, shape index: {}]
  %s1 = inlined_call_operand.vmem [shape: bf16[8,36], index: 1, kind: input, shape index: {}]
  %s2 = inlined_call_operand.vmem [shape: f32[8,1], index: 2, kind: input, shape index: {}]
  %s3 = inlined_call_operand.vmem [shape: bf16[8,512], index: 3, kind: output, shape index: {0}]
  %s4 = inlined_call_operand.vmem [shape: f32[2,8,1], index: 4, kind: output, shape index: {1}]
  %s5 = inlined_call_operand.vmem [shape: f32[2,8,1], index: 5, kind: output, shape index: {2}]
  %6 = xla_tuple %s3, %s4, %s5
  %s7 = sld [smem:[#allocation0]]
  $region99: #{block_forward.3} parent=0
    _
  %s9 = ssub.s32 1, %s7
  %s10 = scalar_select 0, %s9, %s7
  $region1: #{block_forward.3} parent=0
    #allocation2 [shape = 'u8[40960]{0}', space=vmem, size = 0xa000, scoped, tag = 'input window, operand 0']
    loop: start=0, step=1, limit=4
    $region2: #{block_forward.3} parent=1 // loop_pre_header
      _
    $region3: #{block_forward.3} parent=1 // loop_header
      %s12 = sphi 0, %s16
      %p13 = scmp.ge.s32.totalorder %s12, 4
      %s22 = sphi 0, %s24
      %s25 = sphi 0, %s22
      %s26 = sphi 0, %s25
      %s42 = sphi 0, %s26
      %s46 = sphi 0, %s46
      %s48 = sphi 0, %s46
      %s49 = sphi 0, %s48
      %s63 = sphi 0, %s49
      %s67 = sphi 0, %s67
      %s69 = sphi 0, %s67
      %s70 = sphi 0, %s69
      %s84 = sphi 0, %s70
      %s90 = sphi 0, %s92
      %s93 = sphi 0, %s90
      %s94 = sphi 0, %s93
      %s110 = sphi 0, %s94
      %s116 = sphi 0, %s118
      %s119 = sphi 0, %s116
      %s120 = sphi 0, %s119
      %s136 = sphi 0, %s120
      %s142 = sphi 0, %s144
      %s145 = sphi 0, %s142
      %s146 = sphi 0, %s145
      %s162 = sphi 0, %s146
    $region4: #{block_forward.3} parent=1 // loop_header_branch
      %15 = sbr.rel (%p13) target = $region8
    $region5: #{block_forward.3} parent=1 // loop_body
      %s17 = ssub.s32 %s12, 1
      %s18 = ssub.s32 %s12, 2
      %s19 = sadd.s32 %s12, 1
      %s20 = ssub.s32 %s12, %s19
      %p21 = scmp.eq.s32.totalorder %s20, 0
      %s23 = sadd.s32 %s22, 1
      %s24 = scalar_select %p21, %s22, %s23
      %p27 = pneg %p21
      %p28 = scmp.eq.s32.totalorder %s12, 1
      %p29 = por %p27, %p28
      %p30 = scmp.ne.s32.totalorder %s22, %s25
      %p31 = scmp.eq.s32.totalorder %s12, 0
      %p32 = por %p30, %p31
      %p33 = scmp.ne.s32.totalorder %s22, %s25
      %p34 = scmp.eq.s32.totalorder %s17, 1
      %p35 = por %p33, %p34
      %p36 = scmp.ne.s32.totalorder %s25, %s26
      %p37 = scmp.eq.s32.totalorder %s17, 0
      %p38 = por %p36, %p37
      %p39 = scmp.ne.s32.totalorder %s25, %s26
      %p40 = scmp.eq.s32.totalorder %s18, 1
      %p41 = por %p39, %p40
      %p43 = scmp.ne.s32.totalorder %s26, %s42
      %p44 = scmp.eq.s32.totalorder %s18, 0
      %p45 = por %p43, %p44
      %s47 = sadd.s32 %s46, 1
      %p50 = scmp.eq.s32.totalorder %s12, 1
      %p51 = scmp.ne.s32.totalorder %s46, %s48
      %p52 = scmp.eq.s32.totalorder %s12, 0
      %p53 = por %p51, %p52
      %p54 = scmp.ne.s32.totalorder %s46, %s48
      %p55 = scmp.eq.s32.totalorder %s17, 1
      %p56 = por %p54, %p55
      %p57 = scmp.ne.s32.totalorder %s48, %s49
      %p58 = scmp.eq.s32.totalorder %s17, 0
      %p59 = por %p57, %p58
      %p60 = scmp.ne.s32.totalorder %s48, %s49
      %p61 = scmp.eq.s32.totalorder %s18, 1
      %p62 = por %p60, %p61
      %p64 = scmp.ne.s32.totalorder %s49, %s63
      %p65 = scmp.eq.s32.totalorder %s18, 0
      %p66 = por %p64, %p65
      %s68 = sadd.s32 %s67, 1
      %p71 = scmp.eq.s32.totalorder %s12, 1
      %p72 = scmp.ne.s32.totalorder %s67, %s69
      %p73 = scmp.eq.s32.totalorder %s12, 0
      %p74 = por %p72, %p73
      %p75 = scmp.ne.s32.totalorder %s67, %s69
      %p76 = scmp.eq.s32.totalorder %s17, 1
      %p77 = por %p75, %p76
      %p78 = scmp.ne.s32.totalorder %s69, %s70
      %p79 = scmp.eq.s32.totalorder %s17, 0
      %p80 = por %p78, %p79
      %p81 = scmp.ne.s32.totalorder %s69, %s70
      %p82 = scmp.eq.s32.totalorder %s18, 1
      %p83 = por %p81, %p82
      %p85 = scmp.ne.s32.totalorder %s70, %s84
      %p86 = scmp.eq.s32.totalorder %s18, 0
      %p87 = por %p85, %p86
      %s88 = ssub.s32 %s12, %s19
      %p89 = scmp.eq.s32.totalorder %s88, 0
      %s91 = sadd.s32 %s90, 1
      %s92 = scalar_select %p89, %s90, %s91
      %p95 = pneg %p89
      %p96 = scmp.eq.s32.totalorder %s12, 1
      %p97 = por %p95, %p96
      %p98 = scmp.ne.s32.totalorder %s90, %s93
      %p99 = scmp.eq.s32.totalorder %s12, 0
      %p100 = por %p98, %p99
      %p101 = scmp.ne.s32.totalorder %s90, %s93
      %p102 = scmp.eq.s32.totalorder %s17, 1
      %p103 = por %p101, %p102
      %p104 = scmp.ne.s32.totalorder %s93, %s94
      %p105 = scmp.eq.s32.totalorder %s17, 0
      %p106 = por %p104, %p105
      %p107 = scmp.ne.s32.totalorder %s93, %s94
      %p108 = scmp.eq.s32.totalorder %s18, 1
      %p109 = por %p107, %p108
      %p111 = scmp.ne.s32.totalorder %s94, %s110
      %p112 = scmp.eq.s32.totalorder %s18, 0
      %p113 = por %p111, %p112
      %s114 = ssub.s32 %s12, %s19
      %p115 = scmp.eq.s32.totalorder %s114, 0
      %s117 = sadd.s32 %s116, 1
      %s118 = scalar_select %p115, %s116, %s117
      %p121 = pneg %p115
      %p122 = scmp.eq.s32.totalorder %s12, 1
      %p123 = por %p121, %p122
      %p124 = scmp.ne.s32.totalorder %s116, %s119
      %p125 = scmp.eq.s32.totalorder %s12, 0
      %p126 = por %p124, %p125
      %p127 = scmp.ne.s32.totalorder %s116, %s119
      %p128 = scmp.eq.s32.totalorder %s17, 1
      %p129 = por %p127, %p128
      %p130 = scmp.ne.s32.totalorder %s119, %s120
      %p131 = scmp.eq.s32.totalorder %s17, 0
      %p132 = por %p130, %p131
      %p133 = scmp.ne.s32.totalorder %s119, %s120
      %p134 = scmp.eq.s32.totalorder %s18, 1
      %p135 = por %p133, %p134
      %p137 = scmp.ne.s32.totalorder %s120, %s136
      %p138 = scmp.eq.s32.totalorder %s18, 0
      %p139 = por %p137, %p138
      %s140 = ssub.s32 %s12, %s19
      %p141 = scmp.eq.s32.totalorder %s140, 0
      %s143 = sadd.s32 %s142, 1
      %s144 = scalar_select %p141, %s142, %s143
      %p147 = pneg %p141
      %p148 = scmp.eq.s32.totalorder %s12, 1
      %p149 = por %p147, %p148
      %p150 = scmp.ne.s32.totalorder %s142, %s145
      %p151 = scmp.eq.s32.totalorder %s12, 0
      %p152 = por %p150, %p151
      %p153 = scmp.ne.s32.totalorder %s142, %s145
      %p154 = scmp.eq.s32.totalorder %s17, 1
      %p155 = por %p153, %p154
      %p156 = scmp.ne.s32.totalorder %s145, %s146
      %p157 = scmp.eq.s32.totalorder %s17, 0
      %p158 = por %p156, %p157
      %p159 = scmp.ne.s32.totalorder %s145, %s146
      %p160 = scmp.eq.s32.totalorder %s18, 1
      %p161 = por %p159, %p160
      %p163 = scmp.ne.s32.totalorder %s146, %s162
      %p164 = scmp.eq.s32.totalorder %s18, 0
      %p165 = por %p163, %p164
      %p166 = scmp.le.s32.totalorder 1, %s12
      %p167 = scmp.lt.s32.totalorder %s12, 3
      %p168 = pnand %p166, %p167
      %p169 = pneg %p168
      // Predicated region
      $region9: #{block_forward.3} parent=5 // pred_check
        _
      $region10: #{block_forward.3} parent=5 // pred_check_branch
        %171 = sbr.rel (%p168) target = $region12
      $region11: #{block_forward.3} parent=5 // pred_region
        %s172 = ssub.s32 %s12, 1
        // Predicated region
        $region13: #{block_forward.3} parent=11 // pred_check
          %p173 = pneg %p59
        $region14: #{block_forward.3} parent=11 // pred_check_branch
          %175 = sbr.rel (%p173) target = $region16
        $region15: #{block_forward.3} parent=11 // pred_region
          _
        $region16: #{block_forward.3} parent=11 // pred_fallthru
          _
        // Predicated region
        $region17: #{block_forward.3} parent=11 // pred_check
          %p176 = pneg %p80
        $region18: #{block_forward.3} parent=11 // pred_check_branch
          %178 = sbr.rel (%p176) target = $region20
        $region19: #{block_forward.3} parent=11 // pred_region
          _
        $region20: #{block_forward.3} parent=11 // pred_fallthru
          _
      $region12: #{block_forward.3} parent=5 // pred_fallthru
        _
      %p179 = scmp.lt.s32.totalorder %s12, 2
      // Predicated region
      $region21: #{block_forward.3} parent=5 // pred_check
        %p180 = pneg %p179
      $region22: #{block_forward.3} parent=5 // pred_check_branch
        %182 = sbr.rel (%p180) target = $region24
      $region23: #{block_forward.3} parent=5 // pred_region
        // Predicated region
        $region25: #{block_forward.3} parent=23 // pred_check
          %p183 = pneg %p32
        $region26: #{block_forward.3} parent=23 // pred_check_branch
          %185 = sbr.rel (%p183) target = $region28
        $region27: #{block_forward.3} parent=23 // pred_region
          %s186 = sand.u32 %s22, 1
          %s187 = sand.u32 %s22, 1
          %s188 = smul.addr %s187, 40
          %s189 = scalar_lea.vmem [#allocation2], %s188
          %s190 = smul.u32 2, %s12
          %s191 = smul.addr %s190, 4
          %s192 = scalar_lea.vmem %s0, %s191
          // Predicated region
          $region29: #{block_forward.3} parent=27 // pred_check
            _
          $region30: #{block_forward.3} parent=27 // pred_check_branch
            %194 = sbr.rel (0) target = $region32
          $region31: #{block_forward.3} parent=27 // pred_region
            // Predicated region
            $region33: #{block_forward.3} parent=31 // pred_check
              _
            $region34: #{block_forward.3} parent=31 // pred_check_branch
              %196 = sbr.rel (0) target = $region36
            $region35: #{block_forward.3} parent=31 // pred_region
              // Predicated region
              $region48: #{block_forward.3} parent=35 // pred_check
                _
              $region49: #{block_forward.3} parent=35 // pred_check_branch
                %220 = sbr.rel (0) target = $region51
              $region50: #{block_forward.3} parent=35 // pred_region
                loop: start=0, step=1, limit=1
                $region52: #{block_forward.3} parent=50 // loop_pre_header
                  _
                $region53: #{block_forward.3} parent=50 // loop_header
                  %s222 = sphi 0, %s226
                  %p223 = scmp.ge.s32.totalorder %s222, 1
                  %s227 = sphi %s192, %s192
                  %s228 = sphi %s189, %s189
                $region54: #{block_forward.3} parent=50 // loop_header_branch
                  %225 = sbr.rel (%p223) target = $region58
                $region55: #{block_forward.3} parent=50 // loop_body
                  %v229 = vld [vmem:[%s227] sm:$0xff]
                  %230 = vst [vmem:[%s228] sm:$0xff] %v229
                  %v231 = vld [vmem:[%s227 + $0x10] sm:$0xff]
                  %232 = vst [vmem:[%s228 + $0x8] sm:$0xff] %v231
                  %v233 = vld [vmem:[%s227 + $0x20] sm:$0xff]
                  %234 = vst [vmem:[%s228 + $0x10] sm:$0xff] %v233
                  %v235 = vld [vmem:[%s227 + $0x30] sm:$0xff]
                  %236 = vst [vmem:[%s228 + $0x18] sm:$0xff] %v235
                  %v237 = vld [vmem:[%s227 + $0x40] sm:$0xff]
                  %238 = vst [vmem:[%s228 + $0x20] sm:$0xff] %v237
                $region56: #{block_forward.3} parent=50 // loop_footer
                  %s226 = sadd.s32 1, %s222
                $region57: #{block_forward.3} parent=50 // loop_footer_branch
                  %221 = sbr.rel target = $region53
                $region58: #{block_forward.3} parent=50 // loop_exit
                  _
              $region51: #{block_forward.3} parent=35 // pred_fallthru
                _
              // Predicated region
              $region59: #{block_forward.3} parent=35 // pred_check
                _
              $region60: #{block_forward.3} parent=35 // pred_check_branch
                %240 = sbr.rel target = $region62
              $region61: #{block_forward.3} parent=35 // pred_region
                _
              $region62: #{block_forward.3} parent=35 // pred_fallthru
                _
            $region36: #{block_forward.3} parent=31 // pred_fallthru
              _
            // Predicated region
            $region37: #{block_forward.3} parent=31 // pred_check
              _
            $region38: #{block_forward.3} parent=31 // pred_check_branch
              %198 = sbr.rel target = $region40
            $region39: #{block_forward.3} parent=31 // pred_region
              %s200 = ssub.s32 256, 1
              loop: start=0, step=1, limit=1
              $region41: #{block_forward.3} parent=39 // loop_pre_header
                _
              $region42: #{block_forward.3} parent=39 // loop_header
                %s202 = sphi 0, %s206
                %p203 = scmp.ge.s32.totalorder %s202, 1
                %s207 = sphi %s192, %s192
                %s208 = sphi %s189, %s189
              $region43: #{block_forward.3} parent=39 // loop_header_branch
                %205 = sbr.rel (%p203) target = $region47
              $region44: #{block_forward.3} parent=39 // loop_body
                %v209 = vld [vmem:[%s207] sm:%s200]
                %210 = vst [vmem:[%s208] sm:%s200] %v209
                %v211 = vld [vmem:[%s207 + $0x10] sm:%s200]
                %212 = vst [vmem:[%s208 + $0x8] sm:%s200] %v211
                %v213 = vld [vmem:[%s207 + $0x20] sm:%s200]
                %214 = vst [vmem:[%s208 + $0x10] sm:%s200] %v213
                %v215 = vld [vmem:[%s207 + $0x30] sm:%s200]
                %216 = vst [vmem:[%s208 + $0x18] sm:%s200] %v215
                %v217 = vld [vmem:[%s207 + $0x40] sm:%s200]
                %218 = vst [vmem:[%s208 + $0x20] sm:%s200] %v217
              $region45: #{block_forward.3} parent=39 // loop_footer
                %s206 = sadd.s32 1, %s202
              $region46: #{block_forward.3} parent=39 // loop_footer_branch
                %201 = sbr.rel target = $region42
              $region47: #{block_forward.3} parent=39 // loop_exit
                _
            $region40: #{block_forward.3} parent=31 // pred_fallthru
              _
          $region32: #{block_forward.3} parent=27 // pred_fallthru
            _
          %241 = vnop
        $region28: #{block_forward.3} parent=23 // pred_fallthru
          _
      $region24: #{block_forward.3} parent=5 // pred_fallthru
        _
      %p242 = scmp.le.s32.totalorder 1, %s12
      %p243 = scmp.lt.s32.totalorder %s12, 3
      %p244 = pnand %p242, %p243
      %p245 = pneg %p244
      // Predicated region
      $region63: #{block_forward.3} parent=5 // pred_check
        _
      $region64: #{block_forward.3} parent=5 // pred_check_branch
        %247 = sbr.rel (%p244) target = $region66
      $region65: #{block_forward.3} parent=5 // pred_region
        %s248 = ssub.s32 %s12, 1
        %s249 = sand.u32 %s25, 1
        %s250 = sand.u32 %s25, 1
        %s251 = smul.addr %s250, 40
        %s252 = scalar_lea.vmem [#allocation2], %s251
        // Predicated region
        $region67: #{block_forward.3} parent=65 // pred_check
          %p253 = pneg %p38
        $region68: #{block_forward.3} parent=65 // pred_check_branch
          %255 = sbr.rel (%p253) target = $region70
        $region69: #{block_forward.3} parent=65 // pred_region
          _
        $region70: #{block_forward.3} parent=65 // pred_fallthru
          _
        %s256 = sand.u32 %s25, 1
        %s257 = sand.u32 %s25, 1
        %s258 = smul.addr %s257, 40
        %s259 = scalar_lea.vmem [#allocation2], %s258
        %p260 = pneg %p38
        %p261 = pneg %p35
        %p262 = pneg %p59
        %p263 = pneg %p56
        %p264 = pneg %p80
        %p265 = pneg %p77
        %p266 = pneg %p106
        %p267 = pneg %p103
        %s268 = smul.u32 2, %s17
        %p269 = scmp.lt.s32.totalorder %s268, 3
        %s270 = scalar_select %p269, %s268, 3
        %s271 = smul.addr %s270, 4
        %s272 = scalar_lea.vmem %s3, %s271
        %p273 = pneg %p132
        %p274 = pneg %p129
        %p275 = scmp.lt.s32.totalorder %s17, 1
        %s276 = scalar_select %p275, %s17, 1
        %s277 = smul.addr %s276, 8
        %s278 = scalar_lea.vmem %s4, %s277
        %p279 = pneg %p158
        %p280 = pneg %p155
        %p281 = scmp.lt.s32.totalorder %s17, 1
        %s282 = scalar_select %p281, %s17, 1
        %s283 = smul.addr %s282, 8
        %s284 = scalar_lea.vmem %s5, %s283
        %s285 = smul.u32 2, %s17
        %s286 = smul.u32 2, %s17
        %p287 = scmp.lt.s32.totalorder %s286, 3
        %s288 = scalar_select %p287, %s286, 3
        %s289 = smul.addr %s288, 4
        %s290 = scalar_lea.vmem %s3, %s289
        %s291 = smul.u32 2, %s17
        %p292 = scmp.lt.s32.totalorder %s17, 1
        %s293 = scalar_select %p292, %s17, 1
        %s294 = smul.addr %s293, 8
        %s295 = scalar_lea.vmem %s4, %s294
        %p296 = scmp.lt.s32.totalorder %s17, 1
        %s297 = scalar_select %p296, %s17, 1
        %s298 = smul.addr %s297, 8
        %s299 = scalar_lea.vmem %s5, %s298
        %v301 = vld [vmem:[%s1] sm:$0xf]
        %v302 = vld [vmem:[%s252] sm:$0xff]
        %v303 = vld [vmem:[%s252 + $0x8] sm:$0xff]
        %v304 = vld [vmem:[%s252 + $0x10] sm:$0xff]
        %v305 = vld [vmem:[%s252 + $0x18] sm:$0xff]
        %v306 = vld [vmem:[%s252 + $0x20] sm:$0x33]
        %v307 = vld [vmem:[%s2] sm:$0xff]
        %309 = vset.pattern.permute.xlu0 0
        %310 = vperm.xlu0 %309, %v307
        %v311 = vpop.permute.xlu0 %310
        %v318 = vunpack.c.l.b16 %v302
        %v319 = vunpack.c.h.b16 %v302
        %v320 = vunpack.c.l.b16 %v303
        %v321 = vunpack.c.h.b16 %v303
        %v322 = vunpack.c.l.b16 %v304
        %v323 = vunpack.c.h.b16 %v304
        %v324 = vunpack.c.l.b16 %v305
        %v325 = vunpack.c.h.b16 %v305
        %v326 = vunpack.c.l.b16 %v306
        %v327 = vunpack.c.h.b16 %v306
        %v328 = vpack.c.b16 %v320, %v318
        %v329 = vpack.c.b16 %v321, %v319
        %v330 = vpack.c.b16 %v324, %v322
        %v331 = vpack.c.b16 %v325, %v323
        %v332 = vpack.c.b16 %v326, %v326
        %v333 = vpack.c.b16 %v327, %v327
        %vm338 = vcmask 293888
        %v340 = vsel %vm338, %v301, 0
        %vm342 = vcmask 1041408
        %v344 = vsel %vm342, %v332, 0
        %v347 = vsel %vm342, %v333, 0
        %349 = vmatprep.subr.bf16.mxu0 0
        %350 = vmatpush1.bf16.msra.mxu0 0
        %351 = vmatprep.subr.bf16.mxu0 0
        %352 = vmatpush1.bf16.msra.mxu0 0
        %353 = vmatprep.subr.bf16.mxu0 0
        %354 = vmatpush1.bf16.msra.mxu0 0
        %355 = vmatprep.subr.bf16.mxu0 0
        %356 = vmatpush1.bf16.msra.mxu0 0
        %357 = vmatprep.subr.bf16.mxu0 0
        %358 = vmatpush1.bf16.msra.mxu0 0
        %359 = vmatprep.subr.bf16.mxu0 %v347
        %360 = vmatpush1.bf16.msra.mxu0 %v344
        %361 = vmatprep.subr.bf16.mxu0 %v331
        %362 = vmatpush1.bf16.msra.mxu0 %v330
        %363 = vmatprep.subr.bf16.mxu0 %v329
        %364 = vmatpush1.bf16.msra.mxu0 %v328
        %365 = vmatprep.subr.bf16.mxu0 0
        %366 = vmatpush2.bf16.msra.mxu0 0
        %367 = vmatprep.subr.bf16.mxu0 0
        %368 = vmatpush2.bf16.msra.mxu0 0
        %369 = vmatprep.subr.bf16.mxu0 0
        %370 = vmatpush2.bf16.msra.mxu0 0
        %371 = vmatprep.subr.bf16.mxu0 0
        %372 = vmatpush2.bf16.msra.mxu0 0
        %373 = vmatprep.subr.bf16.mxu0 0
        %374 = vmatpush2.bf16.msra.mxu0 0
        %375 = vmatprep.subr.bf16.mxu0 0
        %376 = vmatpush2.bf16.msra.mxu0 0
        %377 = vmatprep.subr.bf16.mxu0 0
        %378 = vmatpush2.bf16.msra.mxu0 0
        %379 = vmatprep.subr.bf16.mxu0 0
        %380 = vmatpush2.bf16.msra.mxu0 0
        %381 = vmatprep.mubr.bf16.mxu0 0
        %382 = vmatmul.mubr.bf16.gmra.mxu0 %v340
        %v383 = vpop.f32.mrf.mxu0
        %v384 = vadd.f32 %v311, %v383
        %v385 = vpop.f32.mrf.mxu0
        %v386 = vadd.f32 %v311, %v385
        %v387 = vpop.f32.mrf.mxu0
        %v388 = vpop.f32.mrf.mxu0
        %389 = vdwg.mxu0
        %v390 = vmax.f32 %v384, 0.0
        %v391 = vmax.f32 %v386, 0.0
        %v392 = vadd.f32 %v390, %v391
        %393 = vadd.xlane.f32.xlu0 %v392
        %v394 = vpop.xlane.xlu0 %393
        %vm395 = vcmask 7168
        %396 = vst.msk [vmem:[%s295] sm:$0xff] %vm395, %v394
        %v397 = vmul.f32 %v390, %v390
        %v398 = vmul.f32 %v391, %v391
        %v399 = vadd.f32 %v397, %v398
        %400 = vadd.xlane.f32.xlu0 %v399
        %v401 = vpop.xlane.xlu0 %400
        %402 = vst.msk [vmem:[%s299] sm:$0xff] %vm395, %v401
        %v403 = vpack.c.bf16 %v390, %v390
        %v404 = vpack.c.bf16 %v391, %v391
        %v407 = vunpack.c.l.b16 %v403
        %v408 = vunpack.c.l.b16 %v404
        %v409 = vpack.c.b16 %v408, %v407
        %411 = vst [vmem:[%s290] sm:$0xff] %v409
        %s412 = smul.u32 2, %s17
        %p413 = scmp.lt.s32.totalorder %s412, 3
        %s414 = scalar_select %p413, %s412, 3
        %s415 = smul.addr %s414, 4
        %s416 = scalar_lea.vmem %s3, %s415
        %p417 = scmp.lt.s32.totalorder %s17, 1
        %s418 = scalar_select %p417, %s17, 1
        %s419 = smul.addr %s418, 8
        %s420 = scalar_lea.vmem %s4, %s419
        %p421 = scmp.lt.s32.totalorder %s17, 1
        %s422 = scalar_select %p421, %s17, 1
        %s423 = smul.addr %s422, 8
        %s424 = scalar_lea.vmem %s5, %s423
        // Predicated region
        $region71: #{block_forward.3} parent=65 // pred_check
          %p425 = pneg %p103
        $region72: #{block_forward.3} parent=65 // pred_check_branch
          %427 = sbr.rel (%p425) target = $region74
        $region73: #{block_forward.3} parent=65 // pred_region
          %s428 = smul.u32 2, %s17
        $region74: #{block_forward.3} parent=65 // pred_fallthru
          _
        // Predicated region
        $region75: #{block_forward.3} parent=65 // pred_check
          %p429 = pneg %p129
        $region76: #{block_forward.3} parent=65 // pred_check_branch
          %431 = sbr.rel (%p429) target = $region78
        $region77: #{block_forward.3} parent=65 // pred_region
          _
        $region78: #{block_forward.3} parent=65 // pred_fallthru
          _
        // Predicated region
        $region79: #{block_forward.3} parent=65 // pred_check
          %p432 = pneg %p155
        $region80: #{block_forward.3} parent=65 // pred_check_branch
          %434 = sbr.rel (%p432) target = $region82
        $region81: #{block_forward.3} parent=65 // pred_region
          _
        $region82: #{block_forward.3} parent=65 // pred_fallthru
          _
      $region66: #{block_forward.3} parent=5 // pred_fallthru
        _
      %p435 = scmp.le.s32.totalorder 2, %s12
      // Predicated region
      $region83: #{block_forward.3} parent=5 // pred_check
        %p436 = pneg %p435
      $region84: #{block_forward.3} parent=5 // pred_check_branch
        %438 = sbr.rel (%p436) target = $region86
      $region85: #{block_forward.3} parent=5 // pred_region
        %s439 = ssub.s32 %s12, 2
        // Predicated region
        $region87: #{block_forward.3} parent=85 // pred_check
          %p440 = pneg %p109
        $region88: #{block_forward.3} parent=85 // pred_check_branch
          %442 = sbr.rel (%p440) target = $region90
        $region89: #{block_forward.3} parent=85 // pred_region
          %s443 = smul.u32 2, %s18
          %p444 = scmp.lt.s32.totalorder %s443, 3
          %s445 = scalar_select %p444, %s443, 3
          %s446 = smul.addr %s445, 4
          %s447 = scalar_lea.vmem %s3, %s446
        $region90: #{block_forward.3} parent=85 // pred_fallthru
          _
        // Predicated region
        $region91: #{block_forward.3} parent=85 // pred_check
          %p448 = pneg %p135
        $region92: #{block_forward.3} parent=85 // pred_check_branch
          %450 = sbr.rel (%p448) target = $region94
        $region93: #{block_forward.3} parent=85 // pred_region
          %p451 = scmp.lt.s32.totalorder %s18, 1
          %s452 = scalar_select %p451, %s18, 1
          %s453 = smul.addr %s452, 8
          %s454 = scalar_lea.vmem %s4, %s453
        $region94: #{block_forward.3} parent=85 // pred_fallthru
          _
        // Predicated region
        $region95: #{block_forward.3} parent=85 // pred_check
          %p455 = pneg %p161
        $region96: #{block_forward.3} parent=85 // pred_check_branch
          %457 = sbr.rel (%p455) target = $region98
        $region97: #{block_forward.3} parent=85 // pred_region
          %p458 = scmp.lt.s32.totalorder %s18, 1
          %s459 = scalar_select %p458, %s18, 1
          %s460 = smul.addr %s459, 8
          %s461 = scalar_lea.vmem %s5, %s460
        $region98: #{block_forward.3} parent=85 // pred_fallthru
          _
      $region86: #{block_forward.3} parent=5 // pred_fallthru
        _
    $region6: #{block_forward.3} parent=1 // loop_footer
      %s16 = sadd.s32 1, %s12
    $region7: #{block_forward.3} parent=1 // loop_footer_branch
      %11 = sbr.rel target = $region3
    $region8: #{block_forward.3} parent=1 // loop_exit
      _

// kernel: tile.23
$region0: #{tile.23}
  #allocation0 [shape = 's32[1]{0}', space=sflag, size = 0x4, scoped, tag = 'scoped memory for tile.23']
  %s0 = inlined_call_operand.vmem [shape: f32[8], index: 0, kind: input, shape index: {}]
  %s1 = inlined_call_operand.vmem [shape: f32[9,8], index: 1, kind: output, shape index: {}]
  // Predicated region
  $region2: #{tile.23} parent=0 // pred_check
    _
  $region3: #{tile.23} parent=0 // pred_check_branch
    %3 = sbr.rel (0) target = $region5
  $region4: #{tile.23} parent=0 // pred_region
    _
  $region5: #{tile.23} parent=0 // pred_fallthru
    _
  %v4 = vld [vmem:[%s0] ss:$0 sm:$0xff]
  %5 = vst [vmem:[%s1] sm:$0xff] %v4
  %s6 = scalar_lea.vmem %s1, 8
  %7 = vst [vmem:[%s6] sm:$0xff] %v4

// kernel: mul.12
$region0: #{mul.12}
  %s0 = inlined_call_operand.vmem [shape: f32[9,8], index: 0, kind: input, shape index: {}]
  %s1 = inlined_call_operand.vmem [shape: f32[72], index: 1, kind: output, shape index: {}]
  $region1: #{mul.12} parent=0
    #allocation0 [shape = 'u8[4096]{0}', space=vmem, size = 0x1000, scoped, tag = 'scoped mem for output reshape']
    %v2 = vld [vmem:[%s0] sm:$0x1]
    %vm3 = vcmask 64512
    %4 = vst.msk [vmem:[#allocation0] sm:$0x1] %vm3, %v2
    %s5 = scalar_lea.vmem %s0, 8
    %v6 = vld [vmem:[%s5] sm:$0x1]
    %7 = vrot.lane.b32.xlu0 %v6, 64
    %v8 = vpop.permute.xlu0 %7
    %vm9 = vcmask 589312
    %10 = vst.msk [vmem:[#allocation0] sm:$0x1] %vm9, %v8
    %s11 = scalar_lea.vmem %s0, 7
    %v12 = vld [vmem:[%s11] sm:$0x1]
    %13 = vrot.lane.b32.xlu0 %v12, 56
    %v14 = vpop.permute.xlu0 %13
    %vm15 = vcmask 523712
    %16 = vst.msk [vmem:[#allocation0] sm:$0x1] %vm15, %v14
    %s17 = scalar_lea.vmem %s0, 6
    %v18 = vld [vmem:[%s17] sm:$0x1]
    %19 = vrot.lane.b32.xlu0 %v18, 48
    %v20 = vpop.permute.xlu0 %19
    %vm21 = vcmask 458112
    %22 = vst.msk [vmem:[#allocation0] sm:$0x1] %vm21, %v20
    %s23 = scalar_lea.vmem %s0, 5
    %v24 = vld [vmem:[%s23] sm:$0x1]
    %25 = vrot.lane.b32.xlu0 %v24, 40
    %v26 = vpop.permute.xlu0 %25
    %vm27 = vcmask 392512
    %28 = vst.msk [vmem:[#allocation0] sm:$0x1] %vm27, %v26
    %s29 = scalar_lea.vmem %s0, 4
    %v30 = vld [vmem:[%s29] sm:$0x1]
    %31 = vrot.lane.b32.xlu0 %v30, 32
    %v32 = vpop.permute.xlu0 %31
    %vm33 = vcmask 326912
    %34 = vst.msk [vmem:[#allocation0] sm:$0x1] %vm33, %v32
    %s35 = scalar_lea.vmem %s0, 3
    %v36 = vld [vmem:[%s35] sm:$0x1]
    %37 = vrot.lane.b32.xlu0 %v36, 24
    %v38 = vpop.permute.xlu0 %37
    %vm39 = vcmask 261312
    %40 = vst.msk [vmem:[#allocation0] sm:$0x1] %vm39, %v38
    %s41 = scalar_lea.vmem %s0, 2
    %v42 = vld [vmem:[%s41] sm:$0x1]
    %43 = vrot.lane.b32.xlu0 %v42, 16
    %v44 = vpop.permute.xlu0 %43
    %vm45 = vcmask 195712
    %46 = vst.msk [vmem:[#allocation0] sm:$0x1] %vm45, %v44
    %s47 = scalar_lea.vmem %s0, 1
    %v48 = vld [vmem:[%s47] sm:$0x1]
    %49 = vrot.lane.b32.xlu0 %v48, 8
    %v50 = vpop.permute.xlu0 %49
    %vm51 = vcmask 130112
    %52 = vst.msk [vmem:[#allocation0] sm:$0x1] %vm51, %v50
    %s54 = sshll.u32 1, 1
    %s55 = ssub.s32 %s54, 1
    %v57 = vld [vmem:[#allocation0] sm:%s55]
    %s58 = sshll.u32 1, 1
    %s59 = ssub.s32 %s58, 1
    %60 = vst [vmem:[%s1] sm:%s59] %v57

// kernel: block_forward.4
$region0: #{block_forward.4}
  #allocation0 [shape = 'u32[]', space=smem, size = 0x4, offset = 0x4, fixed_abs, tag = 'smem constant byte address 0x4 - core index']
  #allocation1 [shape = 'u32[144,128]{1,0:T(1,128)}', space=vmem, size = 0x12000, scoped, tag = 'internal scratch']
  %s0 = inlined_call_operand.vmem [shape: bf16[72,512], index: 0, kind: input, shape index: {}]
  %s1 = inlined_call_operand.vmem [shape: bf16[8,72], index: 1, kind: input, shape index: {}]
  %s2 = inlined_call_operand.vmem [shape: f32[8,1], index: 2, kind: input, shape index: {}]
  %s3 = inlined_call_operand.vmem [shape: bf16[8,512], index: 3, kind: output, shape index: {0}]
  %s4 = inlined_call_operand.vmem [shape: f32[2,8,1], index: 4, kind: output, shape index: {1}]
  %s5 = inlined_call_operand.vmem [shape: f32[2,8,1], index: 5, kind: output, shape index: {2}]
  %6 = xla_tuple %s3, %s4, %s5
  %s7 = sld [smem:[#allocation0]]
  $region99: #{block_forward.4} parent=0
    _
  %s9 = ssub.s32 1, %s7
  %s10 = scalar_select 0, %s9, %s7
  $region1: #{block_forward.4} parent=0
    #allocation2 [shape = 'u8[73728]{0}', space=vmem, size = 0x12000, scoped, tag = 'input window, operand 0']
    loop: start=0, step=1, limit=4
    $region2: #{block_forward.4} parent=1 // loop_pre_header
      _
    $region3: #{block_forward.4} parent=1 // loop_header
      %s12 = sphi 0, %s16
      %p13 = scmp.ge.s32.totalorder %s12, 4
      %s22 = sphi 0, %s24
      %s25 = sphi 0, %s22
      %s26 = sphi 0, %s25
      %s42 = sphi 0, %s26
      %s46 = sphi 0, %s46
      %s48 = sphi 0, %s46
      %s49 = sphi 0, %s48
      %s63 = sphi 0, %s49
      %s67 = sphi 0, %s67
      %s69 = sphi 0, %s67
      %s70 = sphi 0, %s69
      %s84 = sphi 0, %s70
      %s90 = sphi 0, %s92
      %s93 = sphi 0, %s90
      %s94 = sphi 0, %s93
      %s110 = sphi 0, %s94
      %s116 = sphi 0, %s118
      %s119 = sphi 0, %s116
      %s120 = sphi 0, %s119
      %s136 = sphi 0, %s120
      %s142 = sphi 0, %s144
      %s145 = sphi 0, %s142
      %s146 = sphi 0, %s145
      %s162 = sphi 0, %s146
    $region4: #{block_forward.4} parent=1 // loop_header_branch
      %15 = sbr.rel (%p13) target = $region8
    $region5: #{block_forward.4} parent=1 // loop_body
      %s17 = ssub.s32 %s12, 1
      %s18 = ssub.s32 %s12, 2
      %s19 = sadd.s32 %s12, 1
      %s20 = ssub.s32 %s12, %s19
      %p21 = scmp.eq.s32.totalorder %s20, 0
      %s23 = sadd.s32 %s22, 1
      %s24 = scalar_select %p21, %s22, %s23
      %p27 = pneg %p21
      %p28 = scmp.eq.s32.totalorder %s12, 1
      %p29 = por %p27, %p28
      %p30 = scmp.ne.s32.totalorder %s22, %s25
      %p31 = scmp.eq.s32.totalorder %s12, 0
      %p32 = por %p30, %p31
      %p33 = scmp.ne.s32.totalorder %s22, %s25
      %p34 = scmp.eq.s32.totalorder %s17, 1
      %p35 = por %p33, %p34
      %p36 = scmp.ne.s32.totalorder %s25, %s26
      %p37 = scmp.eq.s32.totalorder %s17, 0
      %p38 = por %p36, %p37
      %p39 = scmp.ne.s32.totalorder %s25, %s26
      %p40 = scmp.eq.s32.totalorder %s18, 1
      %p41 = por %p39, %p40
      %p43 = scmp.ne.s32.totalorder %s26, %s42
      %p44 = scmp.eq.s32.totalorder %s18, 0
      %p45 = por %p43, %p44
      %s47 = sadd.s32 %s46, 1
      %p50 = scmp.eq.s32.totalorder %s12, 1
      %p51 = scmp.ne.s32.totalorder %s46, %s48
      %p52 = scmp.eq.s32.totalorder %s12, 0
      %p53 = por %p51, %p52
      %p54 = scmp.ne.s32.totalorder %s46, %s48
      %p55 = scmp.eq.s32.totalorder %s17, 1
      %p56 = por %p54, %p55
      %p57 = scmp.ne.s32.totalorder %s48, %s49
      %p58 = scmp.eq.s32.totalorder %s17, 0
      %p59 = por %p57, %p58
      %p60 = scmp.ne.s32.totalorder %s48, %s49
      %p61 = scmp.eq.s32.totalorder %s18, 1
      %p62 = por %p60, %p61
      %p64 = scmp.ne.s32.totalorder %s49, %s63
      %p65 = scmp.eq.s32.totalorder %s18, 0
      %p66 = por %p64, %p65
      %s68 = sadd.s32 %s67, 1
      %p71 = scmp.eq.s32.totalorder %s12, 1
      %p72 = scmp.ne.s32.totalorder %s67, %s69
      %p73 = scmp.eq.s32.totalorder %s12, 0
      %p74 = por %p72, %p73
      %p75 = scmp.ne.s32.totalorder %s67, %s69
      %p76 = scmp.eq.s32.totalorder %s17, 1
      %p77 = por %p75, %p76
      %p78 = scmp.ne.s32.totalorder %s69, %s70
      %p79 = scmp.eq.s32.totalorder %s17, 0
      %p80 = por %p78, %p79
      %p81 = scmp.ne.s32.totalorder %s69, %s70
      %p82 = scmp.eq.s32.totalorder %s18, 1
      %p83 = por %p81, %p82
      %p85 = scmp.ne.s32.totalorder %s70, %s84
      %p86 = scmp.eq.s32.totalorder %s18, 0
      %p87 = por %p85, %p86
      %s88 = ssub.s32 %s12, %s19
      %p89 = scmp.eq.s32.totalorder %s88, 0
      %s91 = sadd.s32 %s90, 1
      %s92 = scalar_select %p89, %s90, %s91
      %p95 = pneg %p89
      %p96 = scmp.eq.s32.totalorder %s12, 1
      %p97 = por %p95, %p96
      %p98 = scmp.ne.s32.totalorder %s90, %s93
      %p99 = scmp.eq.s32.totalorder %s12, 0
      %p100 = por %p98, %p99
      %p101 = scmp.ne.s32.totalorder %s90, %s93
      %p102 = scmp.eq.s32.totalorder %s17, 1
      %p103 = por %p101, %p102
      %p104 = scmp.ne.s32.totalorder %s93, %s94
      %p105 = scmp.eq.s32.totalorder %s17, 0
      %p106 = por %p104, %p105
      %p107 = scmp.ne.s32.totalorder %s93, %s94
      %p108 = scmp.eq.s32.totalorder %s18, 1
      %p109 = por %p107, %p108
      %p111 = scmp.ne.s32.totalorder %s94, %s110
      %p112 = scmp.eq.s32.totalorder %s18, 0
      %p113 = por %p111, %p112
      %s114 = ssub.s32 %s12, %s19
      %p115 = scmp.eq.s32.totalorder %s114, 0
      %s117 = sadd.s32 %s116, 1
      %s118 = scalar_select %p115, %s116, %s117
      %p121 = pneg %p115
      %p122 = scmp.eq.s32.totalorder %s12, 1
      %p123 = por %p121, %p122
      %p124 = scmp.ne.s32.totalorder %s116, %s119
      %p125 = scmp.eq.s32.totalorder %s12, 0
      %p126 = por %p124, %p125
      %p127 = scmp.ne.s32.totalorder %s116, %s119
      %p128 = scmp.eq.s32.totalorder %s17, 1
      %p129 = por %p127, %p128
      %p130 = scmp.ne.s32.totalorder %s119, %s120
      %p131 = scmp.eq.s32.totalorder %s17, 0
      %p132 = por %p130, %p131
      %p133 = scmp.ne.s32.totalorder %s119, %s120
      %p134 = scmp.eq.s32.totalorder %s18, 1
      %p135 = por %p133, %p134
      %p137 = scmp.ne.s32.totalorder %s120, %s136
      %p138 = scmp.eq.s32.totalorder %s18, 0
      %p139 = por %p137, %p138
      %s140 = ssub.s32 %s12, %s19
      %p141 = scmp.eq.s32.totalorder %s140, 0
      %s143 = sadd.s32 %s142, 1
      %s144 = scalar_select %p141, %s142, %s143
      %p147 = pneg %p141
      %p148 = scmp.eq.s32.totalorder %s12, 1
      %p149 = por %p147, %p148
      %p150 = scmp.ne.s32.totalorder %s142, %s145
      %p151 = scmp.eq.s32.totalorder %s12, 0
      %p152 = por %p150, %p151
      %p153 = scmp.ne.s32.totalorder %s142, %s145
      %p154 = scmp.eq.s32.totalorder %s17, 1
      %p155 = por %p153, %p154
      %p156 = scmp.ne.s32.totalorder %s145, %s146
      %p157 = scmp.eq.s32.totalorder %s17, 0
      %p158 = por %p156, %p157
      %p159 = scmp.ne.s32.totalorder %s145, %s146
      %p160 = scmp.eq.s32.totalorder %s18, 1
      %p161 = por %p159, %p160
      %p163 = scmp.ne.s32.totalorder %s146, %s162
      %p164 = scmp.eq.s32.totalorder %s18, 0
      %p165 = por %p163, %p164
      %p166 = scmp.le.s32.totalorder 1, %s12
      %p167 = scmp.lt.s32.totalorder %s12, 3
      %p168 = pnand %p166, %p167
      %p169 = pneg %p168
      // Predicated region
      $region9: #{block_forward.4} parent=5 // pred_check
        _
      $region10: #{block_forward.4} parent=5 // pred_check_branch
        %171 = sbr.rel (%p168) target = $region12
      $region11: #{block_forward.4} parent=5 // pred_region
        %s172 = ssub.s32 %s12, 1
        // Predicated region
        $region13: #{block_forward.4} parent=11 // pred_check
          %p173 = pneg %p59
        $region14: #{block_forward.4} parent=11 // pred_check_branch
          %175 = sbr.rel (%p173) target = $region16
        $region15: #{block_forward.4} parent=11 // pred_region
          _
        $region16: #{block_forward.4} parent=11 // pred_fallthru
          _
        // Predicated region
        $region17: #{block_forward.4} parent=11 // pred_check
          %p176 = pneg %p80
        $region18: #{block_forward.4} parent=11 // pred_check_branch
          %178 = sbr.rel (%p176) target = $region20
        $region19: #{block_forward.4} parent=11 // pred_region
          _
        $region20: #{block_forward.4} parent=11 // pred_fallthru
          _
      $region12: #{block_forward.4} parent=5 // pred_fallthru
        _
      %p179 = scmp.lt.s32.totalorder %s12, 2
      // Predicated region
      $region21: #{block_forward.4} parent=5 // pred_check
        %p180 = pneg %p179
      $region22: #{block_forward.4} parent=5 // pred_check_branch
        %182 = sbr.rel (%p180) target = $region24
      $region23: #{block_forward.4} parent=5 // pred_region
        // Predicated region
        $region25: #{block_forward.4} parent=23 // pred_check
          %p183 = pneg %p32
        $region26: #{block_forward.4} parent=23 // pred_check_branch
          %185 = sbr.rel (%p183) target = $region28
        $region27: #{block_forward.4} parent=23 // pred_region
          %s186 = sand.u32 %s22, 1
          %s187 = sand.u32 %s22, 1
          %s188 = smul.addr %s187, 72
          %s189 = scalar_lea.vmem [#allocation2], %s188
          %s190 = smul.u32 2, %s12
          %s191 = smul.addr %s190, 4
          %s192 = scalar_lea.vmem %s0, %s191
          // Predicated region
          $region29: #{block_forward.4} parent=27 // pred_check
            _
          $region30: #{block_forward.4} parent=27 // pred_check_branch
            %194 = sbr.rel (0) target = $region32
          $region31: #{block_forward.4} parent=27 // pred_region
            // Predicated region
            $region33: #{block_forward.4} parent=31 // pred_check
              _
            $region34: #{block_forward.4} parent=31 // pred_check_branch
              %196 = sbr.rel (0) target = $region36
            $region35: #{block_forward.4} parent=31 // pred_region
              // Predicated region
              $region48: #{block_forward.4} parent=35 // pred_check
                _
              $region49: #{block_forward.4} parent=35 // pred_check_branch
                %228 = sbr.rel (0) target = $region51
              $region50: #{block_forward.4} parent=35 // pred_region
                loop: start=0, step=1, limit=1
                $region52: #{block_forward.4} parent=50 // loop_pre_header
                  _
                $region53: #{block_forward.4} parent=50 // loop_header
                  %s230 = sphi 0, %s234
                  %p231 = scmp.ge.s32.totalorder %s230, 1
                  %s235 = sphi %s192, %s192
                  %s236 = sphi %s189, %s189
                $region54: #{block_forward.4} parent=50 // loop_header_branch
                  %233 = sbr.rel (%p231) target = $region58
                $region55: #{block_forward.4} parent=50 // loop_body
                  %v237 = vld [vmem:[%s235] sm:$0xff]
                  %238 = vst [vmem:[%s236] sm:$0xff] %v237
                  %v239 = vld [vmem:[%s235 + $0x10] sm:$0xff]
                  %240 = vst [vmem:[%s236 + $0x8] sm:$0xff] %v239
                  %v241 = vld [vmem:[%s235 + $0x20] sm:$0xff]
                  %242 = vst [vmem:[%s236 + $0x10] sm:$0xff] %v241
                  %v243 = vld [vmem:[%s235 + $0x30] sm:$0xff]
                  %244 = vst [vmem:[%s236 + $0x18] sm:$0xff] %v243
                  %v245 = vld [vmem:[%s235 + $0x40] sm:$0xff]
                  %246 = vst [vmem:[%s236 + $0x20] sm:$0xff] %v245
                  %v247 = vld [vmem:[%s235 + $0x50] sm:$0xff]
                  %248 = vst [vmem:[%s236 + $0x28] sm:$0xff] %v247
                  %v249 = vld [vmem:[%s235 + $0x60] sm:$0xff]
                  %250 = vst [vmem:[%s236 + $0x30] sm:$0xff] %v249
                  %v251 = vld [vmem:[%s235 + $0x70] sm:$0xff]
                  %252 = vst [vmem:[%s236 + $0x38] sm:$0xff] %v251
                  %v253 = vld [vmem:[%s235 + $0x80] sm:$0xff]
                  %254 = vst [vmem:[%s236 + $0x40] sm:$0xff] %v253
                $region56: #{block_forward.4} parent=50 // loop_footer
                  %s234 = sadd.s32 1, %s230
                $region57: #{block_forward.4} parent=50 // loop_footer_branch
                  %229 = sbr.rel target = $region53
                $region58: #{block_forward.4} parent=50 // loop_exit
                  _
              $region51: #{block_forward.4} parent=35 // pred_fallthru
                _
              // Predicated region
              $region59: #{block_forward.4} parent=35 // pred_check
                _
              $region60: #{block_forward.4} parent=35 // pred_check_branch
                %256 = sbr.rel target = $region62
              $region61: #{block_forward.4} parent=35 // pred_region
                _
              $region62: #{block_forward.4} parent=35 // pred_fallthru
                _
            $region36: #{block_forward.4} parent=31 // pred_fallthru
              _
            // Predicated region
            $region37: #{block_forward.4} parent=31 // pred_check
              _
            $region38: #{block_forward.4} parent=31 // pred_check_branch
              %198 = sbr.rel target = $region40
            $region39: #{block_forward.4} parent=31 // pred_region
              %s200 = ssub.s32 256, 1
              loop: start=0, step=1, limit=1
              $region41: #{block_forward.4} parent=39 // loop_pre_header
                _
              $region42: #{block_forward.4} parent=39 // loop_header
                %s202 = sphi 0, %s206
                %p203 = scmp.ge.s32.totalorder %s202, 1
                %s207 = sphi %s192, %s192
                %s208 = sphi %s189, %s189
              $region43: #{block_forward.4} parent=39 // loop_header_branch
                %205 = sbr.rel (%p203) target = $region47
              $region44: #{block_forward.4} parent=39 // loop_body
                %v209 = vld [vmem:[%s207] sm:%s200]
                %210 = vst [vmem:[%s208] sm:%s200] %v209
                %v211 = vld [vmem:[%s207 + $0x10] sm:%s200]
                %212 = vst [vmem:[%s208 + $0x8] sm:%s200] %v211
                %v213 = vld [vmem:[%s207 + $0x20] sm:%s200]
                %214 = vst [vmem:[%s208 + $0x10] sm:%s200] %v213
                %v215 = vld [vmem:[%s207 + $0x30] sm:%s200]
                %216 = vst [vmem:[%s208 + $0x18] sm:%s200] %v215
                %v217 = vld [vmem:[%s207 + $0x40] sm:%s200]
                %218 = vst [vmem:[%s208 + $0x20] sm:%s200] %v217
                %v219 = vld [vmem:[%s207 + $0x50] sm:%s200]
                %220 = vst [vmem:[%s208 + $0x28] sm:%s200] %v219
                %v221 = vld [vmem:[%s207 + $0x60] sm:%s200]
                %222 = vst [vmem:[%s208 + $0x30] sm:%s200] %v221
                %v223 = vld [vmem:[%s207 + $0x70] sm:%s200]
                %224 = vst [vmem:[%s208 + $0x38] sm:%s200] %v223
                %v225 = vld [vmem:[%s207 + $0x80] sm:%s200]
                %226 = vst [vmem:[%s208 + $0x40] sm:%s200] %v225
              $region45: #{block_forward.4} parent=39 // loop_footer
                %s206 = sadd.s32 1, %s202
              $region46: #{block_forward.4} parent=39 // loop_footer_branch
                %201 = sbr.rel target = $region42
              $region47: #{block_forward.4} parent=39 // loop_exit
                _
            $region40: #{block_forward.4} parent=31 // pred_fallthru
              _
          $region32: #{block_forward.4} parent=27 // pred_fallthru
            _
          %257 = vnop
        $region28: #{block_forward.4} parent=23 // pred_fallthru
          _
      $region24: #{block_forward.4} parent=5 // pred_fallthru
        _
      %p258 = scmp.le.s32.totalorder 1, %s12
      %p259 = scmp.lt.s32.totalorder %s12, 3
      %p260 = pnand %p258, %p259
      %p261 = pneg %p260
      // Predicated region
      $region63: #{block_forward.4} parent=5 // pred_check
        _
      $region64: #{block_forward.4} parent=5 // pred_check_branch
        %263 = sbr.rel (%p260) target = $region66
      $region65: #{block_forward.4} parent=5 // pred_region
        %s264 = ssub.s32 %s12, 1
        %s265 = sand.u32 %s25, 1
        %s266 = sand.u32 %s25, 1
        %s267 = smul.addr %s266, 72
        %s268 = scalar_lea.vmem [#allocation2], %s267
        // Predicated region
        $region67: #{block_forward.4} parent=65 // pred_check
          %p269 = pneg %p38
        $region68: #{block_forward.4} parent=65 // pred_check_branch
          %271 = sbr.rel (%p269) target = $region70
        $region69: #{block_forward.4} parent=65 // pred_region
          _
        $region70: #{block_forward.4} parent=65 // pred_fallthru
          _
        %s272 = sand.u32 %s25, 1
        %s273 = sand.u32 %s25, 1
        %s274 = smul.addr %s273, 72
        %s275 = scalar_lea.vmem [#allocation2], %s274
        %p276 = pneg %p38
        %p277 = pneg %p35
        %p278 = pneg %p59
        %p279 = pneg %p56
        %p280 = pneg %p80
        %p281 = pneg %p77
        %p282 = pneg %p106
        %p283 = pneg %p103
        %s284 = smul.u32 2, %s17
        %p285 = scmp.lt.s32.totalorder %s284, 3
        %s286 = scalar_select %p285, %s284, 3
        %s287 = smul.addr %s286, 4
        %s288 = scalar_lea.vmem %s3, %s287
        %p289 = pneg %p132
        %p290 = pneg %p129
        %p291 = scmp.lt.s32.totalorder %s17, 1
        %s292 = scalar_select %p291, %s17, 1
        %s293 = smul.addr %s292, 8
        %s294 = scalar_lea.vmem %s4, %s293
        %p295 = pneg %p158
        %p296 = pneg %p155
        %p297 = scmp.lt.s32.totalorder %s17, 1
        %s298 = scalar_select %p297, %s17, 1
        %s299 = smul.addr %s298, 8
        %s300 = scalar_lea.vmem %s5, %s299
        %s301 = smul.u32 2, %s17
        %s302 = smul.u32 2, %s17
        %p303 = scmp.lt.s32.totalorder %s302, 3
        %s304 = scalar_select %p303, %s302, 3
        %s305 = smul.addr %s304, 4
        %s306 = scalar_lea.vmem %s3, %s305
        %s307 = smul.u32 2, %s17
        %p308 = scmp.lt.s32.totalorder %s17, 1
        %s309 = scalar_select %p308, %s17, 1
        %s310 = smul.addr %s309, 8
        %s311 = scalar_lea.vmem %s4, %s310
        %p312 = scmp.lt.s32.totalorder %s17, 1
        %s313 = scalar_select %p312, %s17, 1
        %s314 = smul.addr %s313, 8
        %s315 = scalar_lea.vmem %s5, %s314
        %v317 = vld [vmem:[%s1] sm:$0xf]
        %v318 = vld [vmem:[%s268] sm:$0xff]
        %v319 = vld [vmem:[%s268 + $0x8] sm:$0xff]
        %v320 = vld [vmem:[%s268 + $0x10] sm:$0xff]
        %v321 = vld [vmem:[%s268 + $0x18] sm:$0xff]
        %v322 = vld [vmem:[%s268 + $0x20] sm:$0xff]
        %v323 = vld [vmem:[%s268 + $0x28] sm:$0xff]
        %v324 = vld [vmem:[%s268 + $0x30] sm:$0xff]
        %v325 = vld [vmem:[%s268 + $0x38] sm:$0xff]
        %v326 = vld [vmem:[%s268 + $0x40] sm:$0xff]
        %v327 = vld [vmem:[%s2] sm:$0xff]
        %329 = vset.pattern.permute.xlu0 0
        %330 = vperm.xlu0 %329, %v327
        %v331 = vpop.permute.xlu0 %330
        %v342 = vunpack.c.l.b16 %v318
        %v343 = vunpack.c.h.b16 %v318
        %v344 = vunpack.c.l.b16 %v319
        %v345 = vunpack.c.h.b16 %v319
        %v346 = vunpack.c.l.b16 %v320
        %v347 = vunpack.c.h.b16 %v320
        %v348 = vunpack.c.l.b16 %v321
        %v349 = vunpack.c.h.b16 %v321
        %v350 = vunpack.c.l.b16 %v322
        %v351 = vunpack.c.h.b16 %v322
        %v352 = vunpack.c.l.b16 %v323
        %v353 = vunpack.c.h.b16 %v323
        %v354 = vunpack.c.l.b16 %v324
        %v355 = vunpack.c.h.b16 %v324
        %v356 = vunpack.c.l.b16 %v325
        %v357 = vunpack.c.h.b16 %v325
        %v358 = vunpack.c.l.b16 %v326
        %v359 = vunpack.c.h.b16 %v326
        %v360 = vpack.c.b16 %v344, %v342
        %v361 = vpack.c.b16 %v345, %v343
        %v362 = vpack.c.b16 %v348, %v346
        %v363 = vpack.c.b16 %v349, %v347
        %v364 = vpack.c.b16 %v352, %v350
        %v365 = vpack.c.b16 %v353, %v351
        %v366 = vpack.c.b16 %v356, %v354
        %v367 = vpack.c.b16 %v357, %v355
        %v368 = vpack.c.b16 %v358, %v358
        %v369 = vpack.c.b16 %v359, %v359
        %vm378 = vcmask 588800
        %v380 = vsel %vm378, %v317, 0
        %vm382 = vcmask 1043456
        %v384 = vsel %vm382, %v368, 0
        %v387 = vsel %vm382, %v369, 0
        %389 = vmatprep.subr.bf16.mxu0 0
        %390 = vmatpush1.bf16.msra.mxu0 0
        %391 = vmatprep.subr.bf16.mxu0 0
        %392 = vmatpush1.bf16.msra.mxu0 0
        %393 = vmatprep.subr.bf16.mxu0 0
        %394 = vmatpush1.bf16.msra.mxu0 0
        %395 = vmatprep.subr.bf16.mxu0 %v387
        %396 = vmatpush1.bf16.msra.mxu0 %v384
        %397 = vmatprep.subr.bf16.mxu0 %v367
        %398 = vmatpush1.bf16.msra.mxu0 %v366
        %399 = vmatprep.subr.bf16.mxu0 %v365
        %400 = vmatpush1.bf16.msra.mxu0 %v364
        %401 = vmatprep.subr.bf16.mxu0 %v363
        %402 = vmatpush1.bf16.msra.mxu0 %v362
        %403 = vmatprep.subr.bf16.mxu0 %v361
        %404 = vmatpush1.bf16.msra.mxu0 %v360
        %405 = vmatprep.subr.bf16.mxu0 0
        %406 = vmatpush2.bf16.msra.mxu0 0
        %407 = vmatprep.subr.bf16.mxu0 0
        %408 = vmatpush2.bf16.msra.mxu0 0
        %409 = vmatprep.subr.bf16.mxu0 0
        %410 = vmatpush2.bf16.msra.mxu0 0
        %411 = vmatprep.subr.bf16.mxu0 0
        %412 = vmatpush2.bf16.msra.mxu0 0
        %413 = vmatprep.subr.bf16.mxu0 0
        %414 = vmatpush2.bf16.msra.mxu0 0
        %415 = vmatprep.subr.bf16.mxu0 0
        %416 = vmatpush2.bf16.msra.mxu0 0
        %417 = vmatprep.subr.bf16.mxu0 0
        %418 = vmatpush2.bf16.msra.mxu0 0
        %419 = vmatprep.subr.bf16.mxu0 0
        %420 = vmatpush2.bf16.msra.mxu0 0
        %421 = vmatprep.mubr.bf16.mxu0 0
        %422 = vmatmul.mubr.bf16.gmra.mxu0 %v380
        %v423 = vpop.f32.mrf.mxu0
        %v424 = vadd.f32 %v331, %v423
        %v425 = vpop.f32.mrf.mxu0
        %v426 = vadd.f32 %v331, %v425
        %v427 = vpop.f32.mrf.mxu0
        %v428 = vpop.f32.mrf.mxu0
        %429 = vdwg.mxu0
        %v430 = vmax.f32 %v424, 0.0
        %v431 = vmax.f32 %v426, 0.0
        %v432 = vadd.f32 %v430, %v431
        %433 = vadd.xlane.f32.xlu0 %v432
        %v434 = vpop.xlane.xlu0 %433
        %vm435 = vcmask 7168
        %436 = vst.msk [vmem:[%s311] sm:$0xff] %vm435, %v434
        %v437 = vmul.f32 %v430, %v430
        %v438 = vmul.f32 %v431, %v431
        %v439 = vadd.f32 %v437, %v438
        %440 = vadd.xlane.f32.xlu0 %v439
        %v441 = vpop.xlane.xlu0 %440
        %442 = vst.msk [vmem:[%s315] sm:$0xff] %vm435, %v441
        %v443 = vpack.c.bf16 %v430, %v430
        %v444 = vpack.c.bf16 %v431, %v431
        %v447 = vunpack.c.l.b16 %v443
        %v448 = vunpack.c.l.b16 %v444
        %v449 = vpack.c.b16 %v448, %v447
        %451 = vst [vmem:[%s306] sm:$0xff] %v449
        %s452 = smul.u32 2, %s17
        %p453 = scmp.lt.s32.totalorder %s452, 3
        %s454 = scalar_select %p453, %s452, 3
        %s455 = smul.addr %s454, 4
        %s456 = scalar_lea.vmem %s3, %s455
        %p457 = scmp.lt.s32.totalorder %s17, 1
        %s458 = scalar_select %p457, %s17, 1
        %s459 = smul.addr %s458, 8
        %s460 = scalar_lea.vmem %s4, %s459
        %p461 = scmp.lt.s32.totalorder %s17, 1
        %s462 = scalar_select %p461, %s17, 1
        %s463 = smul.addr %s462, 8
        %s464 = scalar_lea.vmem %s5, %s463
        // Predicated region
        $region71: #{block_forward.4} parent=65 // pred_check
          %p465 = pneg %p103
        $region72: #{block_forward.4} parent=65 // pred_check_branch
          %467 = sbr.rel (%p465) target = $region74
        $region73: #{block_forward.4} parent=65 // pred_region
          %s468 = smul.u32 2, %s17
        $region74: #{block_forward.4} parent=65 // pred_fallthru
          _
        // Predicated region
        $region75: #{block_forward.4} parent=65 // pred_check
          %p469 = pneg %p129
        $region76: #{block_forward.4} parent=65 // pred_check_branch
          %471 = sbr.rel (%p469) target = $region78
        $region77: #{block_forward.4} parent=65 // pred_region
          _
        $region78: #{block_forward.4} parent=65 // pred_fallthru
          _
        // Predicated region
        $region79: #{block_forward.4} parent=65 // pred_check
          %p472 = pneg %p155
        $region80: #{block_forward.4} parent=65 // pred_check_branch
          %474 = sbr.rel (%p472) target = $region82
        $region81: #{block_forward.4} parent=65 // pred_region
          _
        $region82: #{block_forward.4} parent=65 // pred_fallthru
          _
      $region66: #{block_forward.4} parent=5 // pred_fallthru
        _
      %p475 = scmp.le.s32.totalorder 2, %s12
      // Predicated region
      $region83: #{block_forward.4} parent=5 // pred_check
        %p476 = pneg %p475
      $region84: #{block_forward.4} parent=5 // pred_check_branch
        %478 = sbr.rel (%p476) target = $region86
      $region85: #{block_forward.4} parent=5 // pred_region
        %s479 = ssub.s32 %s12, 2
        // Predicated region
        $region87: #{block_forward.4} parent=85 // pred_check
          %p480 = pneg %p109
        $region88: #{block_forward.4} parent=85 // pred_check_branch
          %482 = sbr.rel (%p480) target = $region90
        $region89: #{block_forward.4} parent=85 // pred_region
          %s483 = smul.u32 2, %s18
          %p484 = scmp.lt.s32.totalorder %s483, 3
          %s485 = scalar_select %p484, %s483, 3
          %s486 = smul.addr %s485, 4
          %s487 = scalar_lea.vmem %s3, %s486
        $region90: #{block_forward.4} parent=85 // pred_fallthru
          _
        // Predicated region
        $region91: #{block_forward.4} parent=85 // pred_check
          %p488 = pneg %p135
        $region92: #{block_forward.4} parent=85 // pred_check_branch
          %490 = sbr.rel (%p488) target = $region94
        $region93: #{block_forward.4} parent=85 // pred_region
          %p491 = scmp.lt.s32.totalorder %s18, 1
          %s492 = scalar_select %p491, %s18, 1
          %s493 = smul.addr %s492, 8
          %s494 = scalar_lea.vmem %s4, %s493
        $region94: #{block_forward.4} parent=85 // pred_fallthru
          _
        // Predicated region
        $region95: #{block_forward.4} parent=85 // pred_check
          %p495 = pneg %p161
        $region96: #{block_forward.4} parent=85 // pred_check_branch
          %497 = sbr.rel (%p495) target = $region98
        $region97: #{block_forward.4} parent=85 // pred_region
          %p498 = scmp.lt.s32.totalorder %s18, 1
          %s499 = scalar_select %p498, %s18, 1
          %s500 = smul.addr %s499, 8
          %s501 = scalar_lea.vmem %s5, %s500
        $region98: #{block_forward.4} parent=85 // pred_fallthru
          _
      $region86: #{block_forward.4} parent=5 // pred_fallthru
        _
    $region6: #{block_forward.4} parent=1 // loop_footer
      %s16 = sadd.s32 1, %s12
    $region7: #{block_forward.4} parent=1 // loop_footer_branch
      %11 = sbr.rel target = $region3
    $region8: #{block_forward.4} parent=1 // loop_exit
      _

// kernel: tile.33
$region0: #{tile.33}
  #allocation0 [shape = 's32[1]{0}', space=sflag, size = 0x4, scoped, tag = 'scoped memory for tile.33']
  %s0 = inlined_call_operand.vmem [shape: f32[8], index: 0, kind: input, shape index: {}]
  %s1 = inlined_call_operand.vmem [shape: f32[16,8], index: 1, kind: output, shape index: {}]
  // Predicated region
  $region2: #{tile.33} parent=0 // pred_check
    _
  $region3: #{tile.33} parent=0 // pred_check_branch
    %3 = sbr.rel (0) target = $region5
  $region4: #{tile.33} parent=0 // pred_region
    _
  $region5: #{tile.33} parent=0 // pred_fallthru
    _
  %v4 = vld [vmem:[%s0] ss:$0 sm:$0xff]
  %5 = vst [vmem:[%s1] sm:$0xff] %v4
  %s6 = scalar_lea.vmem %s1, 8
  %7 = vst [vmem:[%s6] sm:$0xff] %v4

// kernel: mul.17
$region0: #{mul.17}
  %s0 = inlined_call_operand.vmem [shape: f32[16,8], index: 0, kind: input, shape index: {}]
  %s1 = inlined_call_operand.vmem [shape: f32[128], index: 1, kind: output, shape index: {}]
  $region1: #{mul.17} parent=0
    #allocation0 [shape = 'u8[4096]{0}', space=vmem, size = 0x1000, scoped, tag = 'scoped mem for output reshape']
    %v2 = vld [vmem:[%s0] sm:$0x1]
    %vm3 = vcmask 64512
    %4 = vst.msk [vmem:[#allocation0] sm:$0x1] %vm3, %v2
    %s5 = scalar_lea.vmem %s0, 15
    %v6 = vld [vmem:[%s5] sm:$0x1]
    %7 = vrot.lane.b32.xlu0 %v6, 120
    %v8 = vpop.permute.xlu0 %7
    %vm9 = vcmask 1048512
    %10 = vst.msk [vmem:[#allocation0] sm:$0x1] %vm9, %v8
    %s11 = scalar_lea.vmem %s0, 14
    %v12 = vld [vmem:[%s11] sm:$0x1]
    %13 = vrot.lane.b32.xlu0 %v12, 112
    %v14 = vpop.permute.xlu0 %13
    %vm15 = vcmask 982912
    %16 = vst.msk [vmem:[#allocation0] sm:$0x1] %vm15, %v14
    %s17 = scalar_lea.vmem %s0, 13
    %v18 = vld [vmem:[%s17] sm:$0x1]
    %19 = vrot.lane.b32.xlu0 %v18, 104
    %v20 = vpop.permute.xlu0 %19
    %vm21 = vcmask 917312
    %22 = vst.msk [vmem:[#allocation0] sm:$0x1] %vm21, %v20
    %s23 = scalar_lea.vmem %s0, 12
    %v24 = vld [vmem:[%s23] sm:$0x1]
    %25 = vrot.lane.b32.xlu0 %v24, 96
    %v26 = vpop.permute.xlu0 %25
    %vm27 = vcmask 851712
    %28 = vst.msk [vmem:[#allocation0] sm:$0x1] %vm27, %v26
    %s29 = scalar_lea.vmem %s0, 11
    %v30 = vld [vmem:[%s29] sm:$0x1]
    %31 = vrot.lane.b32.xlu0 %v30, 88
    %v32 = vpop.permute.xlu0 %31
    %vm33 = vcmask 786112
    %34 = vst.msk [vmem:[#allocation0] sm:$0x1] %vm33, %v32
    %s35 = scalar_lea.vmem %s0, 10
    %v36 = vld [vmem:[%s35] sm:$0x1]
    %37 = vrot.lane.b32.xlu0 %v36, 80
    %v38 = vpop.permute.xlu0 %37
    %vm39 = vcmask 720512
    %40 = vst.msk [vmem:[#allocation0] sm:$0x1] %vm39, %v38
    %s41 = scalar_lea.vmem %s0, 9
    %v42 = vld [vmem:[%s41] sm:$0x1]
    %43 = vrot.lane.b32.xlu0 %v42, 72
    %v44 = vpop.permute.xlu0 %43
    %vm45 = vcmask 654912
    %46 = vst.msk [vmem:[#allocation0] sm:$0x1] %vm45, %v44
    %s47 = scalar_lea.vmem %s0, 8
    %v48 = vld [vmem:[%s47] sm:$0x1]
    %49 = vrot.lane.b32.xlu0 %v48, 64
    %v50 = vpop.permute.xlu0 %49
    %vm51 = vcmask 589312
    %52 = vst.msk [vmem:[#allocation0] sm:$0x1] %vm51, %v50
    %s53 = scalar_lea.vmem %s0, 7
    %v54 = vld [vmem:[%s53] sm:$0x1]
    %55 = vrot.lane.b32.xlu0 %v54, 56
    %v56 = vpop.permute.xlu0 %55
    %vm57 = vcmask 523712
    %58 = vst.msk [vmem:[#allocation0] sm:$0x1] %vm57, %v56
    %s59 = scalar_lea.vmem %s0, 6
    %v60 = vld [vmem:[%s59] sm:$0x1]
    %61 = vrot.lane.b32.xlu0 %v60, 48
    %v62 = vpop.permute.xlu0 %61
    %vm63 = vcmask 458112
    %64 = vst.msk [vmem:[#allocation0] sm:$0x1] %vm63, %v62
    %s65 = scalar_lea.vmem %s0, 5
    %v66 = vld [vmem:[%s65] sm:$0x1]
    %67 = vrot.lane.b32.xlu0 %v66, 40
    %v68 = vpop.permute.xlu0 %67
    %vm69 = vcmask 392512
    %70 = vst.msk [vmem:[#allocation0] sm:$0x1] %vm69, %v68
    %s71 = scalar_lea.vmem %s0, 4
    %v72 = vld [vmem:[%s71] sm:$0x1]
    %73 = vrot.lane.b32.xlu0 %v72, 32
    %v74 = vpop.permute.xlu0 %73
    %vm75 = vcmask 326912
    %76 = vst.msk [vmem:[#allocation0] sm:$0x1] %vm75, %v74
    %s77 = scalar_lea.vmem %s0, 3
    %v78 = vld [vmem:[%s77] sm:$0x1]
    %79 = vrot.lane.b32.xlu0 %v78, 24
    %v80 = vpop.permute.xlu0 %79
    %vm81 = vcmask 261312
    %82 = vst.msk [vmem:[#allocation0] sm:$0x1] %vm81, %v80
    %s83 = scalar_lea.vmem %s0, 2
    %v84 = vld [vmem:[%s83] sm:$0x1]
    %85 = vrot.lane.b32.xlu0 %v84, 16
    %v86 = vpop.permute.xlu0 %85
    %vm87 = vcmask 195712
    %88 = vst.msk [vmem:[#allocation0] sm:$0x1] %vm87, %v86
    %s89 = scalar_lea.vmem %s0, 1
    %v90 = vld [vmem:[%s89] sm:$0x1]
    %91 = vrot.lane.b32.xlu0 %v90, 8
    %v92 = vpop.permute.xlu0 %91
    %vm93 = vcmask 130112
    %94 = vst.msk [vmem:[#allocation0] sm:$0x1] %vm93, %v92
    %s96 = sshll.u32 1, 1
    %s97 = ssub.s32 %s96, 1
    %v99 = vld [vmem:[#allocation0] sm:%s97]
    %s100 = sshll.u32 1, 1
    %s101 = ssub.s32 %s100, 1
    %102 = vst [vmem:[%s1] sm:%s101] %v99

// kernel: block_forward.5
$region0: #{block_forward.5}
  #allocation0 [shape = 'u32[]', space=smem, size = 0x4, offset = 0x4, fixed_abs, tag = 'smem constant byte address 0x4 - core index']
  #allocation1 [shape = 'u32[144,128]{1,0:T(1,128)}', space=vmem, size = 0x12000, scoped, tag = 'internal scratch']
  %s0 = inlined_call_operand.vmem [shape: bf16[128,128], index: 0, kind: input, shape index: {}]
  %s1 = inlined_call_operand.vmem [shape: bf16[8,128], index: 1, kind: input, shape index: {}]
  %s2 = inlined_call_operand.vmem [shape: f32[8,1], index: 2, kind: input, shape index: {}]
  %s3 = inlined_call_operand.vmem [shape: f32[8,128], index: 3, kind: output, shape index: {}]
  %s4 = sld [smem:[#allocation0]]
  $region22: #{block_forward.5} parent=0
    _
  %s6 = ssub.s32 1, %s4
  %s7 = scalar_select 0, %s6, %s4
  // Predicated region
  $region2: #{block_forward.5} parent=0 // pred_check
    _
  $region3: #{block_forward.5} parent=0 // pred_check_branch
    %9 = sbr.rel (0) target = $region5
  $region4: #{block_forward.5} parent=0 // pred_region
    _
  $region5: #{block_forward.5} parent=0 // pred_fallthru
    _
  // Predicated region
  $region6: #{block_forward.5} parent=0 // pred_check
    _
  $region7: #{block_forward.5} parent=0 // pred_check_branch
    %11 = sbr.rel (0) target = $region9
  $region8: #{block_forward.5} parent=0 // pred_region
    _
  $region9: #{block_forward.5} parent=0 // pred_fallthru
    _
  // Predicated region
  $region10: #{block_forward.5} parent=0 // pred_check
    _
  $region11: #{block_forward.5} parent=0 // pred_check_branch
    %13 = sbr.rel (0) target = $region13
  $region12: #{block_forward.5} parent=0 // pred_region
    _
  $region13: #{block_forward.5} parent=0 // pred_fallthru
    _
  %v15 = vld [vmem:[%s1] sm:$0xf]
  %v16 = vld [vmem:[%s0] sm:$0xf]
  %v17 = vld [vmem:[%s0 + $0x4] sm:$0xf]
  %v18 = vld [vmem:[%s0 + $0x8] sm:$0xf]
  %v19 = vld [vmem:[%s0 + $0xc] sm:$0xf]
  %v20 = vld [vmem:[%s0 + $0x10] sm:$0xf]
  %v21 = vld [vmem:[%s0 + $0x14] sm:$0xf]
  %v22 = vld [vmem:[%s0 + $0x18] sm:$0xf]
  %v23 = vld [vmem:[%s0 + $0x1c] sm:$0xf]
  %v24 = vld [vmem:[%s0 + $0x20] sm:$0xf]
  %v25 = vld [vmem:[%s0 + $0x24] sm:$0xf]
  %v26 = vld [vmem:[%s0 + $0x28] sm:$0xf]
  %v27 = vld [vmem:[%s0 + $0x2c] sm:$0xf]
  %v28 = vld [vmem:[%s0 + $0x30] sm:$0xf]
  %v29 = vld [vmem:[%s0 + $0x34] sm:$0xf]
  %v30 = vld [vmem:[%s0 + $0x38] sm:$0xf]
  %v31 = vld [vmem:[%s0 + $0x3c] sm:$0xf]
  %v32 = vld [vmem:[%s2] sm:$0xff]
  %34 = vset.pattern.permute.xlu0 0
  %35 = vperm.xlu0 %34, %v32
  %v36 = vpop.permute.xlu0 %35
  %v54 = vunpack.c.l.b16 %v16
  %v55 = vunpack.c.l.b16 %v17
  %v56 = vunpack.c.l.b16 %v18
  %v57 = vunpack.c.l.b16 %v19
  %v58 = vunpack.c.l.b16 %v20
  %v59 = vunpack.c.l.b16 %v21
  %v60 = vunpack.c.l.b16 %v22
  %v61 = vunpack.c.l.b16 %v23
  %v62 = vunpack.c.l.b16 %v24
  %v63 = vunpack.c.l.b16 %v25
  %v64 = vunpack.c.l.b16 %v26
  %v65 = vunpack.c.l.b16 %v27
  %v66 = vunpack.c.l.b16 %v28
  %v67 = vunpack.c.l.b16 %v29
  %v68 = vunpack.c.l.b16 %v30
  %v69 = vunpack.c.l.b16 %v31
  %v70 = vpack.c.b16 %v55, %v54
  %v71 = vpack.c.b16 %v57, %v56
  %v72 = vpack.c.b16 %v59, %v58
  %v73 = vpack.c.b16 %v61, %v60
  %v74 = vpack.c.b16 %v63, %v62
  %v75 = vpack.c.b16 %v65, %v64
  %v76 = vpack.c.b16 %v67, %v66
  %v77 = vpack.c.b16 %v69, %v68
  %86 = vmatprep.subr.bf16.mxu0 0
  %87 = vmatpush1.bf16.msra.mxu0 %v77
  %88 = vmatprep.subr.bf16.mxu0 0
  %89 = vmatpush1.bf16.msra.mxu0 %v76
  %90 = vmatprep.subr.bf16.mxu0 0
  %91 = vmatpush1.bf16.msra.mxu0 %v75
  %92 = vmatprep.subr.bf16.mxu0 0
  %93 = vmatpush1.bf16.msra.mxu0 %v74
  %94 = vmatprep.subr.bf16.mxu0 0
  %95 = vmatpush1.bf16.msra.mxu0 %v73
  %96 = vmatprep.subr.bf16.mxu0 0
  %97 = vmatpush1.bf16.msra.mxu0 %v72
  %98 = vmatprep.subr.bf16.mxu0 0
  %99 = vmatpush1.bf16.msra.mxu0 %v71
  %100 = vmatprep.subr.bf16.mxu0 0
  %101 = vmatpush1.bf16.msra.mxu0 %v70
  %102 = vmatprep.subr.bf16.mxu0 0
  %103 = vmatpush2.bf16.msra.mxu0 0
  %104 = vmatprep.subr.bf16.mxu0 0
  %105 = vmatpush2.bf16.msra.mxu0 0
  %106 = vmatprep.subr.bf16.mxu0 0
  %107 = vmatpush2.bf16.msra.mxu0 0
  %108 = vmatprep.subr.bf16.mxu0 0
  %109 = vmatpush2.bf16.msra.mxu0 0
  %110 = vmatprep.subr.bf16.mxu0 0
  %111 = vmatpush2.bf16.msra.mxu0 0
  %112 = vmatprep.subr.bf16.mxu0 0
  %113 = vmatpush2.bf16.msra.mxu0 0
  %114 = vmatprep.subr.bf16.mxu0 0
  %115 = vmatpush2.bf16.msra.mxu0 0
  %116 = vmatprep.subr.bf16.mxu0 0
  %117 = vmatpush2.bf16.msra.mxu0 0
  %118 = vmatprep.mubr.bf16.mxu0 0
  %119 = vmatmul.mubr.bf16.gmra.mxu0 %v15
  %v120 = vpop.f32.mrf.mxu0
  %v121 = vadd.f32 %v36, %v120
  %v122 = vpop.f32.mrf.mxu0
  %v123 = vpop.f32.mrf.mxu0
  %v124 = vpop.f32.mrf.mxu0
  %125 = vdwg.mxu0
  %126 = vst [vmem:[%s3] sm:$0xff] %v121
  // Predicated region
  $region14: #{block_forward.5} parent=0 // pred_check
    _
  $region15: #{block_forward.5} parent=0 // pred_check_branch
    %128 = sbr.rel (0) target = $region17
  $region16: #{block_forward.5} parent=0 // pred_region
    _
  $region17: #{block_forward.5} parent=0 // pred_fallthru
    _
  // Predicated region
  $region18: #{block_forward.5} parent=0 // pred_check
    _
  $region19: #{block_forward.5} parent=0 // pred_check_branch
    %130 = sbr.rel (0) target = $region21
  $region20: #{block_forward.5} parent=0 // pred_region
    _
  $region21: #{block_forward.5} parent=0 // pred_fallthru
    _

</llo_original>
